<compile_context>
chip_gen: v6e
topology: v6e:2x2x1
jax: 0.10.0
libtpu: 0.0.40
codegen_flags: <defaults>
</compile_context>

<pallas_src>
import functools

import jax
import jax.numpy as jnp
from jax.experimental import pallas as pl
from jax.experimental.pallas import tpu as pltpu


def _round_up(x, m):
    return ((x + m - 1) // m) * m


def _vmem_capacity_bytes():
    """Per-core VMEM capacity; conservative default if the query is unavailable."""
    try:
        cap = int(pltpu.get_tpu_info().vmem_capacity_bytes)
        if cap > 0:
            return cap
    except Exception:
        pass
    return 64 * 1024 * 1024  # v7x per-TensorCore VMEM (smallest of the three parts)


def _choose_row_tile(m, vmem_cap):
    """Large row tiles for DMA efficiency, but >= 4 grid steps (2 per TC on v7x)."""
    cap_rows = 1024 if vmem_cap >= (96 << 20) else 512
    if m <= 8:
        return 8
    target = _round_up(-(-m // 4), 8)           # aim for >= 4 grid steps
    return max(8, min(cap_rows, target))


def _shared_vmem_bytes(rt, nf_pad, tw_pad, weight_bufs):
    """Rough per-call VMEM budget for the shared head (conservative)."""
    in_x = 2 * rt * nf_pad * 2                                   # bf16 x, double buffered
    out = 2 * rt * tw_pad * 4                                    # output, double buffered
    wts = weight_bufs * (3 * nf_pad * nf_pad + nf_pad * tw_pad) * 2   # bf16 weights
    biases = weight_bufs * (3 * nf_pad + tw_pad) * 4
    live = 3 * rt * nf_pad * 4 + nf_pad * max(nf_pad, tw_pad) * 4     # f32 h/z + weight upcast
    return in_x + out + wts + biases + live


# ---------------------------------------------------------------------------
# Shared head (individual=False):
#   x = flatten(x)
#   x = relu(L1(x)) + x ; x = relu(L2(x)) + x ; x = relu(L3(x)) + x ; x = L4(x)
# ---------------------------------------------------------------------------
def _shared_head_kernel(x_ref, w1_ref, b1_ref, w2_ref, b2_ref,
                        w3_ref, b3_ref, w4_ref, b4_ref, o_ref):
    # bf16 streamed operands, f32 math everywhere (portable: no bf16xbf16 dots).
    h = x_ref[...].astype(jnp.float32)                       # (rt, nf_pad)
    for w_ref, b_ref in ((w1_ref, b1_ref), (w2_ref, b2_ref), (w3_ref, b3_ref)):
        z = jnp.dot(h, w_ref[...].astype(jnp.float32),
                    preferred_element_type=jnp.float32) + b_ref[...]
        h = jnp.maximum(z, 0.0) + h                           # ReLU + residual (f32 VPU)
    out = jnp.dot(h, w4_ref[...].astype(jnp.float32),
                  preferred_element_type=jnp.float32) + b4_ref[...]
    o_ref[...] = out.astype(o_ref.dtype)


def prepare_shared_params(params):
    """Pad to lane-dense widths and cast weights to bf16 ONCE (not per forward call)."""
    w1, b1, w2, b2, w3, b3, w4, b4 = params
    nf = w1.shape[0]
    tw = w4.shape[1]
    nf_pad = _round_up(nf, 128)
    tw_pad = _round_up(tw, 128)

    def pad_w(w, r, c):
        return jnp.pad(w, ((0, r - w.shape[0]), (0, c - w.shape[1]))).astype(jnp.bfloat16)

    def pad_b(b, c):
        b = jnp.asarray(b).reshape(1, -1)
        return jnp.pad(b, ((0, 0), (0, c - b.shape[1]))).astype(jnp.float32)

    return (pad_w(w1, nf_pad, nf_pad), pad_b(b1, nf_pad),
            pad_w(w2, nf_pad, nf_pad), pad_b(b2, nf_pad),
            pad_w(w3, nf_pad, nf_pad), pad_b(b3, nf_pad),
            pad_w(w4, nf_pad, tw_pad), pad_b(b4, tw_pad))


def flatten_head_shared(x, prepared_params, target_window, row_tile=None, out_dtype=None):
    """x: (bs, n_vars, d_model, patch_num) -> (bs, n_vars, target_window)."""
    bs, n_vars, d, p = x.shape
    nf = d * p
    w1p, b1p, w2p, b2p, w3p, b3p, w4p, b4p = prepared_params
    nf_pad = w1p.shape[0]
    tw_pad = w4p.shape[1]
    out_dtype = out_dtype or x.dtype           # pass jnp.bfloat16 to halve output writeback

    cap = _vmem_capacity_bytes()
    budget = int(cap * 0.55)                   # ~35 MiB on v7x, ~70 MiB on v5e/v6e
    vmem_limit = max(int(cap * 0.75), 32 * 1024 * 1024)

    m = bs * n_vars
    if row_tile is None:
        row_tile = _choose_row_tile(m, cap)
    # Clamp so blocks + resident weights fit (budget assumes double-buffered weights,
    # so there is extra headroom when Buffered(1) is accepted below).
    while row_tile > 8 and _shared_vmem_bytes(row_tile, nf_pad, tw_pad, 2) > budget:
        row_tile = max(8, _round_up(row_tile // 2, 8))
    m_pad = _round_up(m, row_tile)

    x2 = x.reshape(m, nf).astype(jnp.bfloat16)          # bf16 streaming of x
    if m_pad != m or nf_pad != nf:                      # skip the extra HBM copy if aligned
        x2 = jnp.pad(x2, ((0, m_pad - m), (0, nf_pad - nf)))

    flops = 2 * m_pad * nf_pad * (3 * nf_pad + tw_pad)
    bytes_accessed = (m_pad * nf_pad * 2
                      + (3 * nf_pad * nf_pad + nf_pad * tw_pad) * 2
                      + (3 * nf_pad + tw_pad) * 4
                      + m_pad * tw_pad * jnp.dtype(out_dtype).itemsize)
    cost = pl.CostEstimate(flops=flops, transcendentals=0, bytes_accessed=bytes_accessed)

    def make_call(single_buffer_weights):
        const = lambda i: (0, 0)

        def wspec(shape):
            if single_buffer_weights:
                try:
                    return pl.BlockSpec(shape, const, pipeline_mode=pl.Buffered(1))
                except Exception:
                    pass
            return pl.BlockSpec(shape, const)

        return pl.pallas_call(
            _shared_head_kernel,
            out_shape=jax.ShapeDtypeStruct((m_pad, tw_pad), out_dtype),
            grid_spec=pltpu.PrefetchScalarGridSpec(
                num_scalar_prefetch=0,
                grid=(m_pad // row_tile,),
                in_specs=[
                    pl.BlockSpec((row_tile, nf_pad), lambda i: (i, 0)),
                    wspec((nf_pad, nf_pad)), wspec((1, nf_pad)),
                    wspec((nf_pad, nf_pad)), wspec((1, nf_pad)),
                    wspec((nf_pad, nf_pad)), wspec((1, nf_pad)),
                    wspec((nf_pad, tw_pad)), wspec((1, tw_pad)),
                ],
                out_specs=pl.BlockSpec((row_tile, tw_pad), lambda i: (i, 0)),
            ),
            compiler_params=pltpu.CompilerParams(
                dimension_semantics=("parallel",),
                vmem_limit_bytes=vmem_limit,
            ),
            cost_estimate=cost,
        )(x2, w1p, b1p, w2p, b2p, w3p, b3p, w4p, b4p)

    try:
        # Single-buffer the constant-index weights (halves resident weight VMEM).
        out = jax.block_until_ready(make_call(True))
    except Exception:
        # Portable fallback: default (double-buffered) weight blocks.
        out = make_call(False)

    if m_pad != m or tw_pad != target_window:
        out = out[:m, :target_window]
    return out.reshape(bs, n_vars, target_window)


# ---------------------------------------------------------------------------
# Individual head (individual=True):
#   per variable i: z = Linear_i(flatten(x[:, i])) ; dropout (identity in eval)
# x is presented as (n_vars, bs, nf): per-variable slices are leading-axis views.
# ---------------------------------------------------------------------------
def _individual_head_kernel(x_ref, w_ref, b_ref, o_ref, *, v_tile):
    # x_ref: (v_tile, bs, nf) bf16 ; w_ref: (v_tile, nf, tw_pad) bf16
    # b_ref: (v_tile, tw_pad) f32 ; o_ref: (v_tile, bs, tw_pad)
    for v in range(v_tile):                        # static unroll, leading-axis views
        xv = x_ref[v].astype(jnp.float32)          # (bs, nf)
        wv = w_ref[v].astype(jnp.float32)          # (nf, tw_pad)
        acc = jnp.dot(xv, wv, preferred_element_type=jnp.float32)
        acc = acc + b_ref[v:v + 1, :]              # (1, tw_pad) broadcast
        o_ref[v] = acc.astype(o_ref.dtype)         # direct store, no concat
    # TODO(synk): head_dropout with p>0 in training mode (eval / p=0 -> identity) not modeled.


def prepare_individual_params(weights, biases):
    """weights: (n_vars, nf, tw), biases: (n_vars, 1, tw) -> padded bf16/f32, done once."""
    n_vars, nf, tw = weights.shape
    tw_pad = _round_up(tw, 128)
    wp = jnp.pad(weights, ((0, 0), (0, 0), (0, tw_pad - tw))).astype(jnp.bfloat16)
    bp = jnp.pad(jnp.asarray(biases).reshape(n_vars, tw),
                 ((0, 0), (0, tw_pad - tw))).astype(jnp.float32)
    return wp, bp


def _choose_v_tile(n_vars, bs, nf, tw_pad, vmem_budget):
    """Largest divisor of n_vars fitting VMEM while keeping >= min(4, n_vars) grid steps."""
    def vmem_bytes(vt):
        x_blk = 2 * vt * bs * nf * 2
        w_blk = 2 * vt * nf * tw_pad * 2
        b_blk = 2 * vt * tw_pad * 4
        o_blk = 2 * vt * bs * tw_pad * 4
        live = (bs * nf + nf * tw_pad + bs * tw_pad) * 4
        return x_blk + w_blk + b_blk + o_blk + live

    min_steps = min(4, n_vars)
    best = 1
    for vt in range(1, n_vars + 1):
        if n_vars % vt:
            continue
        if n_vars // vt < min_steps:
            break
        if vmem_bytes(vt) <= vmem_budget:
            best = vt
    return best


def flatten_head_individual(x, prepared_params, target_window, out_dtype=None):
    """x: (bs, n_vars, d_model, patch_num) -> (bs, n_vars, target_window)."""
    bs, n_vars, d, p = x.shape
    nf = d * p
    tw = target_window
    wp, bp = prepared_params
    tw_pad = wp.shape[-1]
    out_dtype = out_dtype or x.dtype

    cap = _vmem_capacity_bytes()
    budget = int(cap * 0.55)
    vmem_limit = max(int(cap * 0.75), 32 * 1024 * 1024)

    # (n_vars, bs, nf) layout: small HBM transpose, far below the weight stream,
    # so that per-var slices/stores in the kernel are layout-clean leading-axis views.
    xv = jnp.transpose(x.reshape(bs, n_vars, nf), (1, 0, 2)).astype(jnp.bfloat16)

    v_tile = _choose_v_tile(n_vars, bs, nf, tw_pad, budget)

    flops = 2 * bs * n_vars * nf * tw_pad
    bytes_accessed = (bs * n_vars * nf * 2
                      + n_vars * nf * tw_pad * 2
                      + n_vars * tw_pad * 4
                      + bs * n_vars * tw_pad * jnp.dtype(out_dtype).itemsize)

    out = pl.pallas_call(
        functools.partial(_individual_head_kernel, v_tile=v_tile),
        out_shape=jax.ShapeDtypeStruct((n_vars, bs, tw_pad), out_dtype),
        grid_spec=pltpu.PrefetchScalarGridSpec(
            num_scalar_prefetch=0,
            grid=(n_vars // v_tile,),
            in_specs=[
                pl.BlockSpec((v_tile, bs, nf), lambda v: (v, 0, 0)),
                pl.BlockSpec((v_tile, nf, tw_pad), lambda v: (v, 0, 0)),
                pl.BlockSpec((v_tile, tw_pad), lambda v: (v, 0)),
            ],
            out_specs=pl.BlockSpec((v_tile, bs, tw_pad), lambda v: (v, 0, 0)),
        ),
        compiler_params=pltpu.CompilerParams(
            dimension_semantics=("parallel",),
            vmem_limit_bytes=vmem_limit,
        ),
        cost_estimate=pl.CostEstimate(flops=flops, transcendentals=0,
                                      bytes_accessed=bytes_accessed),
    )(xv, wp, bp)

    out = jnp.transpose(out, (1, 0, 2))            # (bs, n_vars, tw_pad)
    return out[:, :, :tw]


# ---------------------------------------------------------------------------
# Pure-JAX references (bf16-rounded operands, f32 math — same as the kernels).
# ---------------------------------------------------------------------------
def _ref_shared(x, params, target_window):
    bs, n_vars, d, p = x.shape
    w1, b1, w2, b2, w3, b3, w4, b4 = params
    hi = jax.lax.Precision.HIGHEST
    h = x.reshape(bs, n_vars, d * p).astype(jnp.bfloat16).astype(jnp.float32)
    for w, b in ((w1, b1), (w2, b2), (w3, b3)):
        wf = w.astype(jnp.bfloat16).astype(jnp.float32)
        z = jnp.dot(h, wf, precision=hi, preferred_element_type=jnp.float32) + b
        h = jnp.maximum(z, 0.0) + h
    wf = w4.astype(jnp.bfloat16).astype(jnp.float32)
    out = jnp.dot(h, wf, precision=hi, preferred_element_type=jnp.float32) + b4
    return out.astype(x.dtype)


def _ref_individual(x, weights, biases):
    bs, n_vars, d, p = x.shape
    hi = jax.lax.Precision.HIGHEST
    z = x.reshape(bs, n_vars, d * p).astype(jnp.bfloat16).astype(jnp.float32)
    w = weights.astype(jnp.bfloat16).astype(jnp.float32)
    out = jnp.einsum("bvf,vft->bvt", z, w, precision=hi,
                     preferred_element_type=jnp.float32)
    out = out + biases[:, 0, :][None].astype(jnp.float32)
    return out.astype(x.dtype)


# ---------------------------------------------------------------------------
if __name__ == "__main__":
    key = jax.random.PRNGKey(0)
    bs, n_vars, d_model, patch_num = 4, 6, 16, 8
    nf = d_model * patch_num            # 128
    target_window = 96

    keys = jax.random.split(key, 11)
    x = jax.random.normal(keys[0], (bs, n_vars, d_model, patch_num), jnp.float32)

    scale = 1.0 / float(nf) ** 0.5
    # --- shared-head params (individual=False): 3x (nf->nf) + 1x (nf->target_window)
    shared_params = (
        jax.random.uniform(keys[1], (nf, nf), jnp.float32, -scale, scale),
        jax.random.uniform(keys[2], (1, nf), jnp.float32, -scale, scale),
        jax.random.uniform(keys[3], (nf, nf), jnp.float32, -scale, scale),
        jax.random.uniform(keys[4], (1, nf), jnp.float32, -scale, scale),
        jax.random.uniform(keys[5], (nf, nf), jnp.float32, -scale, scale),
        jax.random.uniform(keys[6], (1, nf), jnp.float32, -scale, scale),
        jax.random.uniform(keys[7], (nf, target_window), jnp.float32, -scale, scale),
        jax.random.uniform(keys[8], (1, target_window), jnp.float32, -scale, scale),
    )
    # --- individual-head params: per-variable Linear(nf, target_window)
    ind_w = jax.random.uniform(keys[9], (n_vars, nf, target_window), jnp.float32, -scale, scale)
    ind_b = jax.random.uniform(keys[10], (n_vars, 1, target_window), jnp.float32, -scale, scale)

    # ---- shared head (individual=False branch)
    shared_prep = prepare_shared_params(shared_params)
    y_shared = jax.block_until_ready(flatten_head_shared(x, shared_prep, target_window))
    ref_shared = _ref_shared(x, shared_params, target_window)
    assert y_shared.shape == (bs, n_vars, target_window)
    err_s = float(jnp.max(jnp.abs(y_shared.astype(jnp.float32) - ref_shared.astype(jnp.float32))))
    # Loose-ish tolerance covers MXU default-precision differences between the Pallas
    # kernel and the XLA reference across TPU generations; indexing bugs would be O(1).
    assert err_s < 2e-2, f"shared head max abs err {err_s}"

    # ---- individual head (individual=True branch)
    ind_prep = prepare_individual_params(ind_w, ind_b)
    y_ind = jax.block_until_ready(flatten_head_individual(x, ind_prep, target_window))
    ref_ind = _ref_individual(x, ind_w, ind_b)
    assert y_ind.shape == (bs, n_vars, target_window)
    err_i = float(jnp.max(jnp.abs(y_ind.astype(jnp.float32) - ref_ind.astype(jnp.float32))))
    assert err_i < 5e-3, f"individual head max abs err {err_i}"

    print("KERNEL_OK")
</pallas_src>

<mosaic_0001>
module attributes {stable_mosaic.version = 11 : i64} {
  func.func @_shared_head_kernel(%arg0: i32, %arg1: memref<8x128xbf16, #tpu.memory_space<vmem>>, %arg2: memref<128x128xbf16, #tpu.memory_space<vmem>>, %arg3: memref<1x128xf32, #tpu.memory_space<vmem>>, %arg4: memref<128x128xbf16, #tpu.memory_space<vmem>>, %arg5: memref<1x128xf32, #tpu.memory_space<vmem>>, %arg6: memref<128x128xbf16, #tpu.memory_space<vmem>>, %arg7: memref<1x128xf32, #tpu.memory_space<vmem>>, %arg8: memref<128x128xbf16, #tpu.memory_space<vmem>>, %arg9: memref<1x128xf32, #tpu.memory_space<vmem>>, %arg10: memref<8x128xf32, #tpu.memory_space<vmem>>) attributes {dimension_semantics = [#tpu.dimension_semantics<parallel>], iteration_bounds = array<i64: 3>, scalar_prefetch = 0 : i64, scratch_operands = 0 : i64, tpu.core_type = #tpu.core_type<tc>, window_params = [{transform_indices = @transform_0, window_bounds = array<i64: 8, 128>}, {pipeline_mode = #tpu.pipeline_mode<synchronous>, transform_indices = @transform_1, window_bounds = array<i64: 128, 128>}, {pipeline_mode = #tpu.pipeline_mode<synchronous>, transform_indices = @transform_2, window_bounds = array<i64: 1, 128>}, {pipeline_mode = #tpu.pipeline_mode<synchronous>, transform_indices = @transform_3, window_bounds = array<i64: 128, 128>}, {pipeline_mode = #tpu.pipeline_mode<synchronous>, transform_indices = @transform_4, window_bounds = array<i64: 1, 128>}, {pipeline_mode = #tpu.pipeline_mode<synchronous>, transform_indices = @transform_5, window_bounds = array<i64: 128, 128>}, {pipeline_mode = #tpu.pipeline_mode<synchronous>, transform_indices = @transform_6, window_bounds = array<i64: 1, 128>}, {pipeline_mode = #tpu.pipeline_mode<synchronous>, transform_indices = @transform_7, window_bounds = array<i64: 128, 128>}, {pipeline_mode = #tpu.pipeline_mode<synchronous>, transform_indices = @transform_8, window_bounds = array<i64: 1, 128>}, {transform_indices = @transform_9, window_bounds = array<i64: 8, 128>}]} {
    %c0 = arith.constant 0 : index
    %c0_0 = arith.constant 0 : index
    %0 = vector.load %arg1[%c0, %c0_0] : memref<8x128xbf16, #tpu.memory_space<vmem>>, vector<8x128xbf16>
    %1 = arith.extf %0 : vector<8x128xbf16> to vector<8x128xf32>
    %c0_1 = arith.constant 0 : index
    %c0_2 = arith.constant 0 : index
    %2 = vector.load %arg2[%c0_1, %c0_2] : memref<128x128xbf16, #tpu.memory_space<vmem>>, vector<128x128xbf16>
    %3 = arith.extf %2 : vector<128x128xbf16> to vector<128x128xf32>
    %cst = arith.constant dense<0.000000e+00> : vector<8x128xf32>
    %4 = tpu.matmul %1, %3, %cst {dimension_numbers = #tpu.dot_dimension_numbers<[1], [0], [0], [1], [0, 0, 1, 1], [], []>} : vector<8x128xf32>, vector<128x128xf32>, vector<8x128xf32> -> vector<8x128xf32>
    %c0_3 = arith.constant 0 : index
    %c0_4 = arith.constant 0 : index
    %5 = vector.load %arg3[%c0_3, %c0_4] : memref<1x128xf32, #tpu.memory_space<vmem>>, vector<1x128xf32>
    %6 = vector.broadcast %5 : vector<1x128xf32> to vector<8x128xf32>
    %7 = arith.addf %4, %6 : vector<8x128xf32>
    %cst_5 = arith.constant 0.000000e+00 : f32
    %8 = vector.broadcast %cst_5 : f32 to vector<8x128xf32>
    %9 = arith.maximumf %7, %8 : vector<8x128xf32>
    %10 = arith.addf %9, %1 : vector<8x128xf32>
    %c0_6 = arith.constant 0 : index
    %c0_7 = arith.constant 0 : index
    %11 = vector.load %arg4[%c0_6, %c0_7] : memref<128x128xbf16, #tpu.memory_space<vmem>>, vector<128x128xbf16>
    %12 = arith.extf %11 : vector<128x128xbf16> to vector<128x128xf32>
    %cst_8 = arith.constant dense<0.000000e+00> : vector<8x128xf32>
    %13 = tpu.matmul %10, %12, %cst_8 {dimension_numbers = #tpu.dot_dimension_numbers<[1], [0], [0], [1], [0, 0, 1, 1], [], []>} : vector<8x128xf32>, vector<128x128xf32>, vector<8x128xf32> -> vector<8x128xf32>
    %c0_9 = arith.constant 0 : index
    %c0_10 = arith.constant 0 : index
    %14 = vector.load %arg5[%c0_9, %c0_10] : memref<1x128xf32, #tpu.memory_space<vmem>>, vector<1x128xf32>
    %15 = vector.broadcast %14 : vector<1x128xf32> to vector<8x128xf32>
    %16 = arith.addf %13, %15 : vector<8x128xf32>
    %cst_11 = arith.constant 0.000000e+00 : f32
    %17 = vector.broadcast %cst_11 : f32 to vector<8x128xf32>
    %18 = arith.maximumf %16, %17 : vector<8x128xf32>
    %19 = arith.addf %18, %10 : vector<8x128xf32>
    %c0_12 = arith.constant 0 : index
    %c0_13 = arith.constant 0 : index
    %20 = vector.load %arg6[%c0_12, %c0_13] : memref<128x128xbf16, #tpu.memory_space<vmem>>, vector<128x128xbf16>
    %21 = arith.extf %20 : vector<128x128xbf16> to vector<128x128xf32>
    %cst_14 = arith.constant dense<0.000000e+00> : vector<8x128xf32>
    %22 = tpu.matmul %19, %21, %cst_14 {dimension_numbers = #tpu.dot_dimension_numbers<[1], [0], [0], [1], [0, 0, 1, 1], [], []>} : vector<8x128xf32>, vector<128x128xf32>, vector<8x128xf32> -> vector<8x128xf32>
    %c0_15 = arith.constant 0 : index
    %c0_16 = arith.constant 0 : index
    %23 = vector.load %arg7[%c0_15, %c0_16] : memref<1x128xf32, #tpu.memory_space<vmem>>, vector<1x128xf32>
    %24 = vector.broadcast %23 : vector<1x128xf32> to vector<8x128xf32>
    %25 = arith.addf %22, %24 : vector<8x128xf32>
    %cst_17 = arith.constant 0.000000e+00 : f32
    %26 = vector.broadcast %cst_17 : f32 to vector<8x128xf32>
    %27 = arith.maximumf %25, %26 : vector<8x128xf32>
    %28 = arith.addf %27, %19 : vector<8x128xf32>
    %c0_18 = arith.constant 0 : index
    %c0_19 = arith.constant 0 : index
    %29 = vector.load %arg8[%c0_18, %c0_19] : memref<128x128xbf16, #tpu.memory_space<vmem>>, vector<128x128xbf16>
    %30 = arith.extf %29 : vector<128x128xbf16> to vector<128x128xf32>
    %cst_20 = arith.constant dense<0.000000e+00> : vector<8x128xf32>
    %31 = tpu.matmul %28, %30, %cst_20 {dimension_numbers = #tpu.dot_dimension_numbers<[1], [0], [0], [1], [0, 0, 1, 1], [], []>} : vector<8x128xf32>, vector<128x128xf32>, vector<8x128xf32> -> vector<8x128xf32>
    %c0_21 = arith.constant 0 : index
    %c0_22 = arith.constant 0 : index
    %32 = vector.load %arg9[%c0_21, %c0_22] : memref<1x128xf32, #tpu.memory_space<vmem>>, vector<1x128xf32>
    %33 = vector.broadcast %32 : vector<1x128xf32> to vector<8x128xf32>
    %34 = arith.addf %31, %33 : vector<8x128xf32>
    %c0_23 = arith.constant 0 : index
    %c0_24 = arith.constant 0 : index
    %35 = vector.load %arg10[%c0_23, %c0_24] : memref<8x128xf32, #tpu.memory_space<vmem>>, vector<8x128xf32>
    tpu.vector_store %arg10[%c0_23, %c0_24], %34 {strides = array<i32>} : memref<8x128xf32, #tpu.memory_space<vmem>>, vector<8x128xf32>,
    return
  }
  func.func @transform_0(%arg0: i32) -> (i32, i32) {
    %c0_i32 = arith.constant 0 : i32
    %c0_i32_0 = arith.constant 0 : i32
    return %arg0, %c0_i32 : i32, i32
  }
  func.func @transform_1(%arg0: i32) -> (i32, i32) {
    %c0_i32 = arith.constant 0 : i32
    %c0_i32_0 = arith.constant 0 : i32
    %c0_i32_1 = arith.constant 0 : i32
    return %c0_i32, %c0_i32_0 : i32, i32
  }
  func.func @transform_2(%arg0: i32) -> (i32, i32) {
    %c0_i32 = arith.constant 0 : i32
    %c0_i32_0 = arith.constant 0 : i32
    %c0_i32_1 = arith.constant 0 : i32
    return %c0_i32, %c0_i32_0 : i32, i32
  }
  func.func @transform_3(%arg0: i32) -> (i32, i32) {
    %c0_i32 = arith.constant 0 : i32
    %c0_i32_0 = arith.constant 0 : i32
    %c0_i32_1 = arith.constant 0 : i32
    return %c0_i32, %c0_i32_0 : i32, i32
  }
  func.func @transform_4(%arg0: i32) -> (i32, i32) {
    %c0_i32 = arith.constant 0 : i32
    %c0_i32_0 = arith.constant 0 : i32
    %c0_i32_1 = arith.constant 0 : i32
    return %c0_i32, %c0_i32_0 : i32, i32
  }
  func.func @transform_5(%arg0: i32) -> (i32, i32) {
    %c0_i32 = arith.constant 0 : i32
    %c0_i32_0 = arith.constant 0 : i32
    %c0_i32_1 = arith.constant 0 : i32
    return %c0_i32, %c0_i32_0 : i32, i32
  }
  func.func @transform_6(%arg0: i32) -> (i32, i32) {
    %c0_i32 = arith.constant 0 : i32
    %c0_i32_0 = arith.constant 0 : i32
    %c0_i32_1 = arith.constant 0 : i32
    return %c0_i32, %c0_i32_0 : i32, i32
  }
  func.func @transform_7(%arg0: i32) -> (i32, i32) {
    %c0_i32 = arith.constant 0 : i32
    %c0_i32_0 = arith.constant 0 : i32
    %c0_i32_1 = arith.constant 0 : i32
    return %c0_i32, %c0_i32_0 : i32, i32
  }
  func.func @transform_8(%arg0: i32) -> (i32, i32) {
    %c0_i32 = arith.constant 0 : i32
    %c0_i32_0 = arith.constant 0 : i32
    %c0_i32_1 = arith.constant 0 : i32
    return %c0_i32, %c0_i32_0 : i32, i32
  }
  func.func @transform_9(%arg0: i32) -> (i32, i32) {
    %c0_i32 = arith.constant 0 : i32
    %c0_i32_0 = arith.constant 0 : i32
    return %arg0, %c0_i32 : i32, i32
  }
}

module attributes {stable_mosaic.version = 11 : i64} {
  func.func @_shared_head_kernel(%arg0: i32, %arg1: memref<8x128xbf16, #tpu.memory_space<vmem>>, %arg2: memref<128x128xbf16, #tpu.memory_space<vmem>>, %arg3: memref<1x128xf32, #tpu.memory_space<vmem>>, %arg4: memref<128x128xbf16, #tpu.memory_space<vmem>>, %arg5: memref<1x128xf32, #tpu.memory_space<vmem>>, %arg6: memref<128x128xbf16, #tpu.memory_space<vmem>>, %arg7: memref<1x128xf32, #tpu.memory_space<vmem>>, %arg8: memref<128x128xbf16, #tpu.memory_space<vmem>>, %arg9: memref<1x128xf32, #tpu.memory_space<vmem>>, %arg10: memref<8x128xf32, #tpu.memory_space<vmem>>) attributes {dimension_semantics = [#tpu.dimension_semantics<parallel>], iteration_bounds = array<i64: 3>, scalar_prefetch = 0 : i64, scratch_operands = 0 : i64, tpu.core_type = #tpu.core_type<tc>, window_params = [{transform_indices = @transform_0, window_bounds = array<i64: 8, 128>}, {pipeline_mode = #tpu.pipeline_mode<synchronous>, transform_indices = @transform_1, window_bounds = array<i64: 128, 128>}, {pipeline_mode = #tpu.pipeline_mode<synchronous>, transform_indices = @transform_2, window_bounds = array<i64: 1, 128>}, {pipeline_mode = #tpu.pipeline_mode<synchronous>, transform_indices = @transform_3, window_bounds = array<i64: 128, 128>}, {pipeline_mode = #tpu.pipeline_mode<synchronous>, transform_indices = @transform_4, window_bounds = array<i64: 1, 128>}, {pipeline_mode = #tpu.pipeline_mode<synchronous>, transform_indices = @transform_5, window_bounds = array<i64: 128, 128>}, {pipeline_mode = #tpu.pipeline_mode<synchronous>, transform_indices = @transform_6, window_bounds = array<i64: 1, 128>}, {pipeline_mode = #tpu.pipeline_mode<synchronous>, transform_indices = @transform_7, window_bounds = array<i64: 128, 128>}, {pipeline_mode = #tpu.pipeline_mode<synchronous>, transform_indices = @transform_8, window_bounds = array<i64: 1, 128>}, {transform_indices = @transform_9, window_bounds = array<i64: 8, 128>}]} {
    %c0 = arith.constant 0 : index
    %c0_0 = arith.constant 0 : index
    %0 = vector.load %arg1[%c0, %c0_0] : memref<8x128xbf16, #tpu.memory_space<vmem>>, vector<8x128xbf16>
    %1 = arith.extf %0 : vector<8x128xbf16> to vector<8x128xf32>
    %c0_1 = arith.constant 0 : index
    %c0_2 = arith.constant 0 : index
    %2 = vector.load %arg2[%c0_1, %c0_2] : memref<128x128xbf16, #tpu.memory_space<vmem>>, vector<128x128xbf16>
    %3 = arith.extf %2 : vector<128x128xbf16> to vector<128x128xf32>
    %cst = arith.constant dense<0.000000e+00> : vector<8x128xf32>
    %4 = tpu.matmul %1, %3, %cst {dimension_numbers = #tpu.dot_dimension_numbers<[1], [0], [0], [1], [0, 0, 1, 1], [], []>} : vector<8x128xf32>, vector<128x128xf32>, vector<8x128xf32> -> vector<8x128xf32>
    %c0_3 = arith.constant 0 : index
    %c0_4 = arith.constant 0 : index
    %5 = vector.load %arg3[%c0_3, %c0_4] : memref<1x128xf32, #tpu.memory_space<vmem>>, vector<1x128xf32>
    %6 = vector.broadcast %5 : vector<1x128xf32> to vector<8x128xf32>
    %7 = arith.addf %4, %6 : vector<8x128xf32>
    %cst_5 = arith.constant 0.000000e+00 : f32
    %8 = vector.broadcast %cst_5 : f32 to vector<8x128xf32>
    %9 = arith.maximumf %7, %8 : vector<8x128xf32>
    %10 = arith.addf %9, %1 : vector<8x128xf32>
    %c0_6 = arith.constant 0 : index
    %c0_7 = arith.constant 0 : index
    %11 = vector.load %arg4[%c0_6, %c0_7] : memref<128x128xbf16, #tpu.memory_space<vmem>>, vector<128x128xbf16>
    %12 = arith.extf %11 : vector<128x128xbf16> to vector<128x128xf32>
    %cst_8 = arith.constant dense<0.000000e+00> : vector<8x128xf32>
    %13 = tpu.matmul %10, %12, %cst_8 {dimension_numbers = #tpu.dot_dimension_numbers<[1], [0], [0], [1], [0, 0, 1, 1], [], []>} : vector<8x128xf32>, vector<128x128xf32>, vector<8x128xf32> -> vector<8x128xf32>
    %c0_9 = arith.constant 0 : index
    %c0_10 = arith.constant 0 : index
    %14 = vector.load %arg5[%c0_9, %c0_10] : memref<1x128xf32, #tpu.memory_space<vmem>>, vector<1x128xf32>
    %15 = vector.broadcast %14 : vector<1x128xf32> to vector<8x128xf32>
    %16 = arith.addf %13, %15 : vector<8x128xf32>
    %cst_11 = arith.constant 0.000000e+00 : f32
    %17 = vector.broadcast %cst_11 : f32 to vector<8x128xf32>
    %18 = arith.maximumf %16, %17 : vector<8x128xf32>
    %19 = arith.addf %18, %10 : vector<8x128xf32>
    %c0_12 = arith.constant 0 : index
    %c0_13 = arith.constant 0 : index
    %20 = vector.load %arg6[%c0_12, %c0_13] : memref<128x128xbf16, #tpu.memory_space<vmem>>, vector<128x128xbf16>
    %21 = arith.extf %20 : vector<128x128xbf16> to vector<128x128xf32>
    %cst_14 = arith.constant dense<0.000000e+00> : vector<8x128xf32>
    %22 = tpu.matmul %19, %21, %cst_14 {dimension_numbers = #tpu.dot_dimension_numbers<[1], [0], [0], [1], [0, 0, 1, 1], [], []>} : vector<8x128xf32>, vector<128x128xf32>, vector<8x128xf32> -> vector<8x128xf32>
    %c0_15 = arith.constant 0 : index
    %c0_16 = arith.constant 0 : index
    %23 = vector.load %arg7[%c0_15, %c0_16] : memref<1x128xf32, #tpu.memory_space<vmem>>, vector<1x128xf32>
    %24 = vector.broadcast %23 : vector<1x128xf32> to vector<8x128xf32>
    %25 = arith.addf %22, %24 : vector<8x128xf32>
    %cst_17 = arith.constant 0.000000e+00 : f32
    %26 = vector.broadcast %cst_17 : f32 to vector<8x128xf32>
    %27 = arith.maximumf %25, %26 : vector<8x128xf32>
    %28 = arith.addf %27, %19 : vector<8x128xf32>
    %c0_18 = arith.constant 0 : index
    %c0_19 = arith.constant 0 : index
    %29 = vector.load %arg8[%c0_18, %c0_19] : memref<128x128xbf16, #tpu.memory_space<vmem>>, vector<128x128xbf16>
    %30 = arith.extf %29 : vector<128x128xbf16> to vector<128x128xf32>
    %cst_20 = arith.constant dense<0.000000e+00> : vector<8x128xf32>
    %31 = tpu.matmul %28, %30, %cst_20 {dimension_numbers = #tpu.dot_dimension_numbers<[1], [0], [0], [1], [0, 0, 1, 1], [], []>} : vector<8x128xf32>, vector<128x128xf32>, vector<8x128xf32> -> vector<8x128xf32>
    %c0_21 = arith.constant 0 : index
    %c0_22 = arith.constant 0 : index
    %32 = vector.load %arg9[%c0_21, %c0_22] : memref<1x128xf32, #tpu.memory_space<vmem>>, vector<1x128xf32>
    %33 = vector.broadcast %32 : vector<1x128xf32> to vector<8x128xf32>
    %34 = arith.addf %31, %33 : vector<8x128xf32>
    %c0_23 = arith.constant 0 : index
    %c0_24 = arith.constant 0 : index
    %35 = vector.load %arg10[%c0_23, %c0_24] : memref<8x128xf32, #tpu.memory_space<vmem>>, vector<8x128xf32>
    tpu.vector_store %arg10[%c0_23, %c0_24], %34 {strides = array<i32>} : memref<8x128xf32, #tpu.memory_space<vmem>>, vector<8x128xf32>,
    return
  }
  func.func @transform_0(%arg0: i32) -> (i32, i32) {
    %c0_i32 = arith.constant 0 : i32
    %c0_i32_0 = arith.constant 0 : i32
    return %arg0, %c0_i32 : i32, i32
  }
  func.func @transform_1(%arg0: i32) -> (i32, i32) {
    %c0_i32 = arith.constant 0 : i32
    %c0_i32_0 = arith.constant 0 : i32
    %c0_i32_1 = arith.constant 0 : i32
    return %c0_i32, %c0_i32_0 : i32, i32
  }
  func.func @transform_2(%arg0: i32) -> (i32, i32) {
    %c0_i32 = arith.constant 0 : i32
    %c0_i32_0 = arith.constant 0 : i32
    %c0_i32_1 = arith.constant 0 : i32
    return %c0_i32, %c0_i32_0 : i32, i32
  }
  func.func @transform_3(%arg0: i32) -> (i32, i32) {
    %c0_i32 = arith.constant 0 : i32
    %c0_i32_0 = arith.constant 0 : i32
    %c0_i32_1 = arith.constant 0 : i32
    return %c0_i32, %c0_i32_0 : i32, i32
  }
  func.func @transform_4(%arg0: i32) -> (i32, i32) {
    %c0_i32 = arith.constant 0 : i32
    %c0_i32_0 = arith.constant 0 : i32
    %c0_i32_1 = arith.constant 0 : i32
    return %c0_i32, %c0_i32_0 : i32, i32
  }
  func.func @transform_5(%arg0: i32) -> (i32, i32) {
    %c0_i32 = arith.constant 0 : i32
    %c0_i32_0 = arith.constant 0 : i32
    %c0_i32_1 = arith.constant 0 : i32
    return %c0_i32, %c0_i32_0 : i32, i32
  }
  func.func @transform_6(%arg0: i32) -> (i32, i32) {
    %c0_i32 = arith.constant 0 : i32
    %c0_i32_0 = arith.constant 0 : i32
    %c0_i32_1 = arith.constant 0 : i32
    return %c0_i32, %c0_i32_0 : i32, i32
  }
  func.func @transform_7(%arg0: i32) -> (i32, i32) {
    %c0_i32 = arith.constant 0 : i32
    %c0_i32_0 = arith.constant 0 : i32
    %c0_i32_1 = arith.constant 0 : i32
    return %c0_i32, %c0_i32_0 : i32, i32
  }
  func.func @transform_8(%arg0: i32) -> (i32, i32) {
    %c0_i32 = arith.constant 0 : i32
    %c0_i32_0 = arith.constant 0 : i32
    %c0_i32_1 = arith.constant 0 : i32
    return %c0_i32, %c0_i32_0 : i32, i32
  }
  func.func @transform_9(%arg0: i32) -> (i32, i32) {
    %c0_i32 = arith.constant 0 : i32
    %c0_i32_0 = arith.constant 0 : i32
    return %arg0, %c0_i32 : i32, i32
  }
}

</mosaic_0001>

<llo_original>
// kernel: tpu_custom_call.1
$region0: #{tpu_custom_call.1}
  #allocation0 [shape = 'u32[]', space=smem, size = 0x4, offset = 0x4, fixed_abs, tag = 'smem constant byte address 0x4 - core index']
  #allocation1 [shape = 'u32[144,128]{1,0:T(1,128)}', space=vmem, size = 0x12000, scoped, tag = 'internal scratch']
  %s0 = inlined_call_operand.hbm [shape: bf16[24,128], index: 0, kind: input, shape index: {}]
  %s1 = inlined_call_operand.hbm [shape: bf16[128,128], index: 1, kind: input, shape index: {}]
  %s2 = inlined_call_operand.vmem [shape: f32[1,128], index: 2, kind: input, shape index: {}]
  %s3 = inlined_call_operand.hbm [shape: bf16[128,128], index: 3, kind: input, shape index: {}]
  %s4 = inlined_call_operand.vmem [shape: f32[1,128], index: 4, kind: input, shape index: {}]
  %s5 = inlined_call_operand.hbm [shape: bf16[128,128], index: 5, kind: input, shape index: {}]
  %s6 = inlined_call_operand.vmem [shape: f32[1,128], index: 6, kind: input, shape index: {}]
  %s7 = inlined_call_operand.hbm [shape: bf16[128,128], index: 7, kind: input, shape index: {}]
  %s8 = inlined_call_operand.vmem [shape: f32[1,128], index: 8, kind: input, shape index: {}]
  %s9 = inlined_call_operand.hbm [shape: f32[24,128], index: 9, kind: output, shape index: {}]
  %s10 = sld [smem:[#allocation0]]
  $region89: #{tpu_custom_call.1} parent=0
    _
  %s12 = ssub.s32 1, %s10
  %s13 = scalar_select 0, %s12, %s10
  $region1: #{tpu_custom_call.1} parent=0
    #allocation2 [shape = 'u8[4096]{0}', space=vmem, size = 0x1000, scoped, tag = 'input window, operand 0']
    #allocation3 [shape = 's32[2]{0}', space=sflag, size = 0x8, scoped, tag = 'scoped memory for tpu_custom_call.1']
    #allocation4 [shape = 's32[2]{0}', space=sflag, size = 0x8, scoped, tag = 'scoped memory for tpu_custom_call.1']
    #allocation5 [shape = 'u8[32768]{0}', space=vmem, size = 0x8000, scoped, tag = 'input window, operand 1, single buffered']
    #allocation6 [shape = 's32[1]{0}', space=sflag, size = 0x4, scoped, tag = 'scoped memory for tpu_custom_call.1']
    #allocation7 [shape = 'u8[32768]{0}', space=vmem, size = 0x8000, scoped, tag = 'input window, operand 3, single buffered']
    #allocation8 [shape = 'u8[32768]{0}', space=vmem, size = 0x8000, scoped, tag = 'input window, operand 5, single buffered']
    #allocation9 [shape = 's32[1]{0}', space=sflag, size = 0x4, scoped, tag = 'scoped memory for tpu_custom_call.1']
    #allocation10 [shape = 'u8[32768]{0}', space=vmem, size = 0x8000, scoped, tag = 'input window, operand 7, single buffered']
    #allocation11 [shape = 'u8[8192]{0}', space=vmem, size = 0x2000, scoped, tag = 'output window, operand 0']
    %14 = vsyncpa [#allocation3], 0
    %s15 = scalar_lea.sflag [#allocation3], 1
    %16 = vsyncpa %s15, 0
    %17 = vsyncpa [#allocation6], 0
    %18 = vsyncpa [#allocation9], 0
    %19 = vsyncpa [#allocation4], 0
    %s20 = scalar_lea.sflag [#allocation4], 1
    %21 = vsyncpa %s20, 0
    loop: start=0, step=1, limit=5
    $region2: #{tpu_custom_call.1} parent=1 // loop_pre_header
      _
    $region3: #{tpu_custom_call.1} parent=1 // loop_header
      %s23 = sphi 0, %s27
      %p24 = scmp.ge.s32.totalorder %s23, 5
      %s33 = sphi 0, %s35
      %s36 = sphi 0, %s33
      %s37 = sphi 0, %s36
      %s53 = sphi 0, %s37
      %s57 = sphi 0, %s57
      %s59 = sphi 0, %s57
      %s60 = sphi 0, %s59
      %s74 = sphi 0, %s60
      %s78 = sphi 0, %s78
      %s80 = sphi 0, %s78
      %s81 = sphi 0, %s80
      %s95 = sphi 0, %s81
      %s99 = sphi 0, %s99
      %s101 = sphi 0, %s99
      %s102 = sphi 0, %s101
      %s116 = sphi 0, %s102
      %s120 = sphi 0, %s120
      %s122 = sphi 0, %s120
      %s123 = sphi 0, %s122
      %s137 = sphi 0, %s123
      %s141 = sphi 0, %s141
      %s143 = sphi 0, %s141
      %s144 = sphi 0, %s143
      %s158 = sphi 0, %s144
      %s162 = sphi 0, %s162
      %s164 = sphi 0, %s162
      %s165 = sphi 0, %s164
      %s179 = sphi 0, %s165
      %s183 = sphi 0, %s183
      %s185 = sphi 0, %s183
      %s186 = sphi 0, %s185
      %s200 = sphi 0, %s186
      %s204 = sphi 0, %s204
      %s206 = sphi 0, %s204
      %s207 = sphi 0, %s206
      %s221 = sphi 0, %s207
      %s227 = sphi 0, %s229
      %s230 = sphi 0, %s227
      %s231 = sphi 0, %s230
      %s247 = sphi 0, %s231
    $region4: #{tpu_custom_call.1} parent=1 // loop_header_branch
      %26 = sbr.rel (%p24) target = $region8
    $region5: #{tpu_custom_call.1} parent=1 // loop_body
      %s28 = ssub.s32 %s23, 1
      %s29 = ssub.s32 %s23, 2
      %s30 = sadd.s32 %s23, 1
      %s31 = ssub.s32 %s23, %s30
      %p32 = scmp.eq.s32.totalorder %s31, 0
      %s34 = sadd.s32 %s33, 1
      %s35 = scalar_select %p32, %s33, %s34
      %p38 = pneg %p32
      %p39 = scmp.eq.s32.totalorder %s23, 2
      %p40 = por %p38, %p39
      %p41 = scmp.ne.s32.totalorder %s33, %s36
      %p42 = scmp.eq.s32.totalorder %s23, 0
      %p43 = por %p41, %p42
      %p44 = scmp.ne.s32.totalorder %s33, %s36
      %p45 = scmp.eq.s32.totalorder %s28, 2
      %p46 = por %p44, %p45
      %p47 = scmp.ne.s32.totalorder %s36, %s37
      %p48 = scmp.eq.s32.totalorder %s28, 0
      %p49 = por %p47, %p48
      %p50 = scmp.ne.s32.totalorder %s36, %s37
      %p51 = scmp.eq.s32.totalorder %s29, 2
      %p52 = por %p50, %p51
      %p54 = scmp.ne.s32.totalorder %s37, %s53
      %p55 = scmp.eq.s32.totalorder %s29, 0
      %p56 = por %p54, %p55
      %s58 = sadd.s32 %s57, 1
      %p61 = scmp.eq.s32.totalorder %s23, 2
      %p62 = scmp.ne.s32.totalorder %s57, %s59
      %p63 = scmp.eq.s32.totalorder %s23, 0
      %p64 = por %p62, %p63
      %p65 = scmp.ne.s32.totalorder %s57, %s59
      %p66 = scmp.eq.s32.totalorder %s28, 2
      %p67 = por %p65, %p66
      %p68 = scmp.ne.s32.totalorder %s59, %s60
      %p69 = scmp.eq.s32.totalorder %s28, 0
      %p70 = por %p68, %p69
      %p71 = scmp.ne.s32.totalorder %s59, %s60
      %p72 = scmp.eq.s32.totalorder %s29, 2
      %p73 = por %p71, %p72
      %p75 = scmp.ne.s32.totalorder %s60, %s74
      %p76 = scmp.eq.s32.totalorder %s29, 0
      %p77 = por %p75, %p76
      %s79 = sadd.s32 %s78, 1
      %p82 = scmp.eq.s32.totalorder %s23, 2
      %p83 = scmp.ne.s32.totalorder %s78, %s80
      %p84 = scmp.eq.s32.totalorder %s23, 0
      %p85 = por %p83, %p84
      %p86 = scmp.ne.s32.totalorder %s78, %s80
      %p87 = scmp.eq.s32.totalorder %s28, 2
      %p88 = por %p86, %p87
      %p89 = scmp.ne.s32.totalorder %s80, %s81
      %p90 = scmp.eq.s32.totalorder %s28, 0
      %p91 = por %p89, %p90
      %p92 = scmp.ne.s32.totalorder %s80, %s81
      %p93 = scmp.eq.s32.totalorder %s29, 2
      %p94 = por %p92, %p93
      %p96 = scmp.ne.s32.totalorder %s81, %s95
      %p97 = scmp.eq.s32.totalorder %s29, 0
      %p98 = por %p96, %p97
      %s100 = sadd.s32 %s99, 1
      %p103 = scmp.eq.s32.totalorder %s23, 2
      %p104 = scmp.ne.s32.totalorder %s99, %s101
      %p105 = scmp.eq.s32.totalorder %s23, 0
      %p106 = por %p104, %p105
      %p107 = scmp.ne.s32.totalorder %s99, %s101
      %p108 = scmp.eq.s32.totalorder %s28, 2
      %p109 = por %p107, %p108
      %p110 = scmp.ne.s32.totalorder %s101, %s102
      %p111 = scmp.eq.s32.totalorder %s28, 0
      %p112 = por %p110, %p111
      %p113 = scmp.ne.s32.totalorder %s101, %s102
      %p114 = scmp.eq.s32.totalorder %s29, 2
      %p115 = por %p113, %p114
      %p117 = scmp.ne.s32.totalorder %s102, %s116
      %p118 = scmp.eq.s32.totalorder %s29, 0
      %p119 = por %p117, %p118
      %s121 = sadd.s32 %s120, 1
      %p124 = scmp.eq.s32.totalorder %s23, 2
      %p125 = scmp.ne.s32.totalorder %s120, %s122
      %p126 = scmp.eq.s32.totalorder %s23, 0
      %p127 = por %p125, %p126
      %p128 = scmp.ne.s32.totalorder %s120, %s122
      %p129 = scmp.eq.s32.totalorder %s28, 2
      %p130 = por %p128, %p129
      %p131 = scmp.ne.s32.totalorder %s122, %s123
      %p132 = scmp.eq.s32.totalorder %s28, 0
      %p133 = por %p131, %p132
      %p134 = scmp.ne.s32.totalorder %s122, %s123
      %p135 = scmp.eq.s32.totalorder %s29, 2
      %p136 = por %p134, %p135
      %p138 = scmp.ne.s32.totalorder %s123, %s137
      %p139 = scmp.eq.s32.totalorder %s29, 0
      %p140 = por %p138, %p139
      %s142 = sadd.s32 %s141, 1
      %p145 = scmp.eq.s32.totalorder %s23, 2
      %p146 = scmp.ne.s32.totalorder %s141, %s143
      %p147 = scmp.eq.s32.totalorder %s23, 0
      %p148 = por %p146, %p147
      %p149 = scmp.ne.s32.totalorder %s141, %s143
      %p150 = scmp.eq.s32.totalorder %s28, 2
      %p151 = por %p149, %p150
      %p152 = scmp.ne.s32.totalorder %s143, %s144
      %p153 = scmp.eq.s32.totalorder %s28, 0
      %p154 = por %p152, %p153
      %p155 = scmp.ne.s32.totalorder %s143, %s144
      %p156 = scmp.eq.s32.totalorder %s29, 2
      %p157 = por %p155, %p156
      %p159 = scmp.ne.s32.totalorder %s144, %s158
      %p160 = scmp.eq.s32.totalorder %s29, 0
      %p161 = por %p159, %p160
      %s163 = sadd.s32 %s162, 1
      %p166 = scmp.eq.s32.totalorder %s23, 2
      %p167 = scmp.ne.s32.totalorder %s162, %s164
      %p168 = scmp.eq.s32.totalorder %s23, 0
      %p169 = por %p167, %p168
      %p170 = scmp.ne.s32.totalorder %s162, %s164
      %p171 = scmp.eq.s32.totalorder %s28, 2
      %p172 = por %p170, %p171
      %p173 = scmp.ne.s32.totalorder %s164, %s165
      %p174 = scmp.eq.s32.totalorder %s28, 0
      %p175 = por %p173, %p174
      %p176 = scmp.ne.s32.totalorder %s164, %s165
      %p177 = scmp.eq.s32.totalorder %s29, 2
      %p178 = por %p176, %p177
      %p180 = scmp.ne.s32.totalorder %s165, %s179
      %p181 = scmp.eq.s32.totalorder %s29, 0
      %p182 = por %p180, %p181
      %s184 = sadd.s32 %s183, 1
      %p187 = scmp.eq.s32.totalorder %s23, 2
      %p188 = scmp.ne.s32.totalorder %s183, %s185
      %p189 = scmp.eq.s32.totalorder %s23, 0
      %p190 = por %p188, %p189
      %p191 = scmp.ne.s32.totalorder %s183, %s185
      %p192 = scmp.eq.s32.totalorder %s28, 2
      %p193 = por %p191, %p192
      %p194 = scmp.ne.s32.totalorder %s185, %s186
      %p195 = scmp.eq.s32.totalorder %s28, 0
      %p196 = por %p194, %p195
      %p197 = scmp.ne.s32.totalorder %s185, %s186
      %p198 = scmp.eq.s32.totalorder %s29, 2
      %p199 = por %p197, %p198
      %p201 = scmp.ne.s32.totalorder %s186, %s200
      %p202 = scmp.eq.s32.totalorder %s29, 0
      %p203 = por %p201, %p202
      %s205 = sadd.s32 %s204, 1
      %p208 = scmp.eq.s32.totalorder %s23, 2
      %p209 = scmp.ne.s32.totalorder %s204, %s206
      %p210 = scmp.eq.s32.totalorder %s23, 0
      %p211 = por %p209, %p210
      %p212 = scmp.ne.s32.totalorder %s204, %s206
      %p213 = scmp.eq.s32.totalorder %s28, 2
      %p214 = por %p212, %p213
      %p215 = scmp.ne.s32.totalorder %s206, %s207
      %p216 = scmp.eq.s32.totalorder %s28, 0
      %p217 = por %p215, %p216
      %p218 = scmp.ne.s32.totalorder %s206, %s207
      %p219 = scmp.eq.s32.totalorder %s29, 2
      %p220 = por %p218, %p219
      %p222 = scmp.ne.s32.totalorder %s207, %s221
      %p223 = scmp.eq.s32.totalorder %s29, 0
      %p224 = por %p222, %p223
      %s225 = ssub.s32 %s23, %s30
      %p226 = scmp.eq.s32.totalorder %s225, 0
      %s228 = sadd.s32 %s227, 1
      %s229 = scalar_select %p226, %s227, %s228
      %p232 = pneg %p226
      %p233 = scmp.eq.s32.totalorder %s23, 2
      %p234 = por %p232, %p233
      %p235 = scmp.ne.s32.totalorder %s227, %s230
      %p236 = scmp.eq.s32.totalorder %s23, 0
      %p237 = por %p235, %p236
      %p238 = scmp.ne.s32.totalorder %s227, %s230
      %p239 = scmp.eq.s32.totalorder %s28, 2
      %p240 = por %p238, %p239
      %p241 = scmp.ne.s32.totalorder %s230, %s231
      %p242 = scmp.eq.s32.totalorder %s28, 0
      %p243 = por %p241, %p242
      %p244 = scmp.ne.s32.totalorder %s230, %s231
      %p245 = scmp.eq.s32.totalorder %s29, 2
      %p246 = por %p244, %p245
      %p248 = scmp.ne.s32.totalorder %s231, %s247
      %p249 = scmp.eq.s32.totalorder %s29, 0
      %p250 = por %p248, %p249
      %p251 = scmp.le.s32.totalorder 1, %s23
      %p252 = scmp.lt.s32.totalorder %s23, 4
      %p253 = pnand %p251, %p252
      %p254 = pneg %p253
      // Predicated region
      $region9: #{tpu_custom_call.1} parent=5 // pred_check
        _
      $region10: #{tpu_custom_call.1} parent=5 // pred_check_branch
        %256 = sbr.rel (%p253) target = $region12
      $region11: #{tpu_custom_call.1} parent=5 // pred_region
        %s257 = ssub.s32 %s23, 1
        // Predicated region
        $region13: #{tpu_custom_call.1} parent=11 // pred_check
          %p258 = pneg %p70
        $region14: #{tpu_custom_call.1} parent=11 // pred_check_branch
          %260 = sbr.rel (%p258) target = $region16
        $region15: #{tpu_custom_call.1} parent=11 // pred_region
          %s262 = ssub.s32 1024, 1024
          %263 = vsyncadd [#allocation6], %s262
          %s264 = sshll.u32 [#allocation5], 4
          %s265 = int_to_ptr.vmem [resolvable:$true] %s264
          %270 = dma.hbm_to_vmem [thread:$0]  %s1, 1024, %s265, [#allocation6], 64, 64, 4
        $region16: #{tpu_custom_call.1} parent=11 // pred_fallthru
          _
        // Predicated region
        $region17: #{tpu_custom_call.1} parent=11 // pred_check
          %p271 = pneg %p91
        $region18: #{tpu_custom_call.1} parent=11 // pred_check_branch
          %273 = sbr.rel (%p271) target = $region20
        $region19: #{tpu_custom_call.1} parent=11 // pred_region
          _
        $region20: #{tpu_custom_call.1} parent=11 // pred_fallthru
          _
        // Predicated region
        $region21: #{tpu_custom_call.1} parent=11 // pred_check
          %p274 = pneg %p112
        $region22: #{tpu_custom_call.1} parent=11 // pred_check_branch
          %276 = sbr.rel (%p274) target = $region24
        $region23: #{tpu_custom_call.1} parent=11 // pred_region
          %s278 = ssub.s32 1024, 1024
          %279 = vsyncadd [#allocation6], %s278
          %s280 = sshll.u32 [#allocation7], 4
          %s281 = int_to_ptr.vmem [resolvable:$true] %s280
          %286 = dma.hbm_to_vmem [thread:$0]  %s3, 1024, %s281, [#allocation6], 64, 64, 4
        $region24: #{tpu_custom_call.1} parent=11 // pred_fallthru
          _
        // Predicated region
        $region25: #{tpu_custom_call.1} parent=11 // pred_check
          %p287 = pneg %p133
        $region26: #{tpu_custom_call.1} parent=11 // pred_check_branch
          %289 = sbr.rel (%p287) target = $region28
        $region27: #{tpu_custom_call.1} parent=11 // pred_region
          _
        $region28: #{tpu_custom_call.1} parent=11 // pred_fallthru
          _
        // Predicated region
        $region29: #{tpu_custom_call.1} parent=11 // pred_check
          %p290 = pneg %p154
        $region30: #{tpu_custom_call.1} parent=11 // pred_check_branch
          %292 = sbr.rel (%p290) target = $region32
        $region31: #{tpu_custom_call.1} parent=11 // pred_region
          %s294 = ssub.s32 1024, 1024
          %295 = vsyncadd [#allocation9], %s294
          %s296 = sshll.u32 [#allocation8], 4
          %s297 = int_to_ptr.vmem [resolvable:$true] %s296
          %302 = dma.hbm_to_vmem [thread:$0]  %s5, 1024, %s297, [#allocation9], 64, 64, 4
        $region32: #{tpu_custom_call.1} parent=11 // pred_fallthru
          _
        // Predicated region
        $region33: #{tpu_custom_call.1} parent=11 // pred_check
          %p303 = pneg %p175
        $region34: #{tpu_custom_call.1} parent=11 // pred_check_branch
          %305 = sbr.rel (%p303) target = $region36
        $region35: #{tpu_custom_call.1} parent=11 // pred_region
          _
        $region36: #{tpu_custom_call.1} parent=11 // pred_fallthru
          _
        // Predicated region
        $region37: #{tpu_custom_call.1} parent=11 // pred_check
          %p306 = pneg %p196
        $region38: #{tpu_custom_call.1} parent=11 // pred_check_branch
          %308 = sbr.rel (%p306) target = $region40
        $region39: #{tpu_custom_call.1} parent=11 // pred_region
          %s310 = ssub.s32 1024, 1024
          %311 = vsyncadd [#allocation9], %s310
          %s312 = sshll.u32 [#allocation10], 4
          %s313 = int_to_ptr.vmem [resolvable:$true] %s312
          %318 = dma.hbm_to_vmem [thread:$0]  %s7, 1024, %s313, [#allocation9], 64, 64, 4
        $region40: #{tpu_custom_call.1} parent=11 // pred_fallthru
          _
        // Predicated region
        $region41: #{tpu_custom_call.1} parent=11 // pred_check
          %p319 = pneg %p217
        $region42: #{tpu_custom_call.1} parent=11 // pred_check_branch
          %321 = sbr.rel (%p319) target = $region44
        $region43: #{tpu_custom_call.1} parent=11 // pred_region
          _
        $region44: #{tpu_custom_call.1} parent=11 // pred_fallthru
          _
      $region12: #{tpu_custom_call.1} parent=5 // pred_fallthru
        _
      %p322 = scmp.lt.s32.totalorder %s23, 3
      // Predicated region
      $region45: #{tpu_custom_call.1} parent=5 // pred_check
        %p323 = pneg %p322
      $region46: #{tpu_custom_call.1} parent=5 // pred_check_branch
        %325 = sbr.rel (%p323) target = $region48
      $region47: #{tpu_custom_call.1} parent=5 // pred_region
        // Predicated region
        $region49: #{tpu_custom_call.1} parent=47 // pred_check
          %p326 = pneg %p43
        $region50: #{tpu_custom_call.1} parent=47 // pred_check_branch
          %328 = sbr.rel (%p326) target = $region52
        $region51: #{tpu_custom_call.1} parent=47 // pred_region
          %s329 = sand.u32 %s33, 1
          %s330 = scalar_lea.sflag [#allocation3], %s329
          %s331 = sand.u32 %s33, 1
          %s332 = smul.addr %s331, 4
          %s333 = scalar_lea.vmem [#allocation2], %s332
          %s335 = ssub.s32 64, 64
          %336 = vsyncadd %s330, %s335
          %s337 = smul.addr %s23, 64
          %s338 = scalar_lea.hbm %s0, %s337
          %s340 = sshll.u32 %s333, 4
          %s341 = int_to_ptr.vmem [resolvable:$true] %s340
          %343 = dma.hbm_to_vmem [thread:$0]  %s338, 64, %s341, %s330
        $region52: #{tpu_custom_call.1} parent=47 // pred_fallthru
          _
      $region48: #{tpu_custom_call.1} parent=5 // pred_fallthru
        _
      %p344 = scmp.le.s32.totalorder 1, %s23
      %p345 = scmp.lt.s32.totalorder %s23, 4
      %p346 = pnand %p344, %p345
      %p347 = pneg %p346
      // Predicated region
      $region53: #{tpu_custom_call.1} parent=5 // pred_check
        _
      $region54: #{tpu_custom_call.1} parent=5 // pred_check_branch
        %349 = sbr.rel (%p346) target = $region56
      $region55: #{tpu_custom_call.1} parent=5 // pred_region
        %s350 = ssub.s32 %s23, 1
        %s351 = sand.u32 %s36, 1
        %s352 = scalar_lea.sflag [#allocation3], %s351
        %s353 = sand.u32 %s36, 1
        %s354 = smul.addr %s353, 4
        %s355 = scalar_lea.vmem [#allocation2], %s354
        // Predicated region
        $region57: #{tpu_custom_call.1} parent=55 // pred_check
          %p356 = pneg %p49
        $region58: #{tpu_custom_call.1} parent=55 // pred_check_branch
          %358 = sbr.rel (%p356) target = $region60
        $region59: #{tpu_custom_call.1} parent=55 // pred_region
          %359 = dma.done %s352, 64
        $region60: #{tpu_custom_call.1} parent=55 // pred_fallthru
          _
        // Predicated region
        $region61: #{tpu_custom_call.1} parent=55 // pred_check
          %p360 = pneg %p70
        $region62: #{tpu_custom_call.1} parent=55 // pred_check_branch
          %362 = sbr.rel (%p360) target = $region64
        $region63: #{tpu_custom_call.1} parent=55 // pred_region
          %363 = dma.done [#allocation6], 1024
        $region64: #{tpu_custom_call.1} parent=55 // pred_fallthru
          _
        // Predicated region
        $region65: #{tpu_custom_call.1} parent=55 // pred_check
          %p364 = pneg %p112
        $region66: #{tpu_custom_call.1} parent=55 // pred_check_branch
          %366 = sbr.rel (%p364) target = $region68
        $region67: #{tpu_custom_call.1} parent=55 // pred_region
          %367 = dma.done [#allocation6], 1024
        $region68: #{tpu_custom_call.1} parent=55 // pred_fallthru
          _
        // Predicated region
        $region69: #{tpu_custom_call.1} parent=55 // pred_check
          %p368 = pneg %p154
        $region70: #{tpu_custom_call.1} parent=55 // pred_check_branch
          %370 = sbr.rel (%p368) target = $region72
        $region71: #{tpu_custom_call.1} parent=55 // pred_region
          %371 = dma.done [#allocation9], 1024
        $region72: #{tpu_custom_call.1} parent=55 // pred_fallthru
          _
        // Predicated region
        $region73: #{tpu_custom_call.1} parent=55 // pred_check
          %p372 = pneg %p196
        $region74: #{tpu_custom_call.1} parent=55 // pred_check_branch
          %374 = sbr.rel (%p372) target = $region76
        $region75: #{tpu_custom_call.1} parent=55 // pred_region
          %375 = dma.done [#allocation9], 1024
        $region76: #{tpu_custom_call.1} parent=55 // pred_fallthru
          _
        %s376 = sand.u32 %s36, 1
        %s377 = scalar_lea.sflag [#allocation3], %s376
        %s378 = sand.u32 %s36, 1
        %s379 = smul.addr %s378, 4
        %s380 = scalar_lea.vmem [#allocation2], %s379
        %p381 = pneg %p49
        %p382 = pneg %p46
        %p383 = pneg %p70
        %p384 = pneg %p67
        %p385 = pneg %p91
        %p386 = pneg %p88
        %p387 = pneg %p112
        %p388 = pneg %p109
        %p389 = pneg %p133
        %p390 = pneg %p130
        %p391 = pneg %p154
        %p392 = pneg %p151
        %p393 = pneg %p175
        %p394 = pneg %p172
        %p395 = pneg %p196
        %p396 = pneg %p193
        %p397 = pneg %p217
        %p398 = pneg %p214
        %p399 = pneg %p243
        %p400 = pneg %p240
        %s401 = sand.u32 %s230, 1
        %s402 = scalar_lea.sflag [#allocation4], %s401
        %s403 = sand.u32 %s230, 1
        %s404 = smul.addr %s403, 8
        %s405 = scalar_lea.vmem [#allocation11], %s404
        %v406 = vld [vmem:[%s355] sm:$0xf]
        %v407 = vunpack.c.l.bf16 %v406
        %v408 = vld [vmem:[#allocation5] sm:$0xf]
        %v409 = vld [vmem:[#allocation5 + $0x4] sm:$0xf]
        %v410 = vld [vmem:[#allocation5 + $0x8] sm:$0xf]
        %v411 = vld [vmem:[#allocation5 + $0xc] sm:$0xf]
        %v412 = vld [vmem:[#allocation5 + $0x10] sm:$0xf]
        %v413 = vld [vmem:[#allocation5 + $0x14] sm:$0xf]
        %v414 = vld [vmem:[#allocation5 + $0x18] sm:$0xf]
        %v415 = vld [vmem:[#allocation5 + $0x1c] sm:$0xf]
        %v416 = vld [vmem:[#allocation5 + $0x20] sm:$0xf]
        %v417 = vld [vmem:[#allocation5 + $0x24] sm:$0xf]
        %v418 = vld [vmem:[#allocation5 + $0x28] sm:$0xf]
        %v419 = vld [vmem:[#allocation5 + $0x2c] sm:$0xf]
        %v420 = vld [vmem:[#allocation5 + $0x30] sm:$0xf]
        %v421 = vld [vmem:[#allocation5 + $0x34] sm:$0xf]
        %v422 = vld [vmem:[#allocation5 + $0x38] sm:$0xf]
        %v423 = vld [vmem:[#allocation5 + $0x3c] sm:$0xf]
        %v424 = vunpack.c.l.bf16 %v408
        %v425 = vunpack.c.l.bf16 %v409
        %v426 = vunpack.c.l.bf16 %v410
        %v427 = vunpack.c.l.bf16 %v411
        %v428 = vunpack.c.l.bf16 %v412
        %v429 = vunpack.c.l.bf16 %v413
        %v430 = vunpack.c.l.bf16 %v414
        %v431 = vunpack.c.l.bf16 %v415
        %v432 = vunpack.c.l.bf16 %v416
        %v433 = vunpack.c.l.bf16 %v417
        %v434 = vunpack.c.l.bf16 %v418
        %v435 = vunpack.c.l.bf16 %v419
        %v436 = vunpack.c.l.bf16 %v420
        %v437 = vunpack.c.l.bf16 %v421
        %v438 = vunpack.c.l.bf16 %v422
        %v439 = vunpack.c.l.bf16 %v423
        %v440 = vld [vmem:[%s2] sm:$0x1]
        %v442 = vlaneseq
        %v443 = vshrl.u32 %v442, 7
        %v444 = vsub.s32 0, %v443
        %v445 = vrot.slane %v440, %v444
        %447 = vmatprep.subr.mxu0 0.0
        %448 = vmatpush1.msra.mxu0 %v439
        %449 = vmatprep.subr.mxu0 0.0
        %450 = vmatpush1.msra.mxu0 %v438
        %451 = vmatprep.subr.mxu0 0.0
        %452 = vmatpush1.msra.mxu0 %v437
        %453 = vmatprep.subr.mxu0 0.0
        %454 = vmatpush1.msra.mxu0 %v436
        %455 = vmatprep.subr.mxu0 0.0
        %456 = vmatpush1.msra.mxu0 %v435
        %457 = vmatprep.subr.mxu0 0.0
        %458 = vmatpush1.msra.mxu0 %v434
        %459 = vmatprep.subr.mxu0 0.0
        %460 = vmatpush1.msra.mxu0 %v433
        %461 = vmatprep.subr.mxu0 0.0
        %462 = vmatpush1.msra.mxu0 %v432
        %463 = vmatprep.subr.mxu0 0.0
        %464 = vmatpush1.msra.mxu0 %v431
        %465 = vmatprep.subr.mxu0 0.0
        %466 = vmatpush1.msra.mxu0 %v430
        %467 = vmatprep.subr.mxu0 0.0
        %468 = vmatpush1.msra.mxu0 %v429
        %469 = vmatprep.subr.mxu0 0.0
        %470 = vmatpush1.msra.mxu0 %v428
        %471 = vmatprep.subr.mxu0 0.0
        %472 = vmatpush1.msra.mxu0 %v427
        %473 = vmatprep.subr.mxu0 0.0
        %474 = vmatpush1.msra.mxu0 %v426
        %475 = vmatprep.subr.mxu0 0.0
        %476 = vmatpush1.msra.mxu0 %v425
        %477 = vmatprep.subr.mxu0 0.0
        %478 = vmatpush1.msra.mxu0 %v424
        %479 = vmatprep.subr.mxu0 0.0
        %480 = vmatpush2.msra.mxu0 0.0
        %481 = vmatprep.subr.mxu0 0.0
        %482 = vmatpush2.msra.mxu0 0.0
        %483 = vmatprep.subr.mxu0 0.0
        %484 = vmatpush2.msra.mxu0 0.0
        %485 = vmatprep.subr.mxu0 0.0
        %486 = vmatpush2.msra.mxu0 0.0
        %487 = vmatprep.subr.mxu0 0.0
        %488 = vmatpush2.msra.mxu0 0.0
        %489 = vmatprep.subr.mxu0 0.0
        %490 = vmatpush2.msra.mxu0 0.0
        %491 = vmatprep.subr.mxu0 0.0
        %492 = vmatpush2.msra.mxu0 0.0
        %493 = vmatprep.subr.mxu0 0.0
        %494 = vmatpush2.msra.mxu0 0.0
        %495 = vmatprep.subr.mxu0 0.0
        %496 = vmatpush2.msra.mxu0 0.0
        %497 = vmatprep.subr.mxu0 0.0
        %498 = vmatpush2.msra.mxu0 0.0
        %499 = vmatprep.subr.mxu0 0.0
        %500 = vmatpush2.msra.mxu0 0.0
        %501 = vmatprep.subr.mxu0 0.0
        %502 = vmatpush2.msra.mxu0 0.0
        %503 = vmatprep.subr.mxu0 0.0
        %504 = vmatpush2.msra.mxu0 0.0
        %505 = vmatprep.subr.mxu0 0.0
        %506 = vmatpush2.msra.mxu0 0.0
        %507 = vmatprep.subr.mxu0 0.0
        %508 = vmatpush2.msra.mxu0 0.0
        %509 = vmatprep.subr.mxu0 0.0
        %510 = vmatpush2.msra.mxu0 0.0
        %511 = vmatprep.mubr.f32.mxu0 0.0
        %512 = vmatmul.mubr.f32.gmra.mxu0 %v407
        %v513 = vpop.f32.mrf.mxu0
        %v514 = vadd.f32 %v445, %v513
        %v515 = vpop.f32.mrf.mxu0
        %516 = vdwg.mxu0
        %v517 = vmax.f32 %v514, 0.0
        %v518 = vadd.f32 %v517, %v407
        %v519 = vld [vmem:[#allocation7] sm:$0xf]
        %v520 = vld [vmem:[#allocation7 + $0x4] sm:$0xf]
        %v521 = vld [vmem:[#allocation7 + $0x8] sm:$0xf]
        %v522 = vld [vmem:[#allocation7 + $0xc] sm:$0xf]
        %v523 = vld [vmem:[#allocation7 + $0x10] sm:$0xf]
        %v524 = vld [vmem:[#allocation7 + $0x14] sm:$0xf]
        %v525 = vld [vmem:[#allocation7 + $0x18] sm:$0xf]
        %v526 = vld [vmem:[#allocation7 + $0x1c] sm:$0xf]
        %v527 = vld [vmem:[#allocation7 + $0x20] sm:$0xf]
        %v528 = vld [vmem:[#allocation7 + $0x24] sm:$0xf]
        %v529 = vld [vmem:[#allocation7 + $0x28] sm:$0xf]
        %v530 = vld [vmem:[#allocation7 + $0x2c] sm:$0xf]
        %v531 = vld [vmem:[#allocation7 + $0x30] sm:$0xf]
        %v532 = vld [vmem:[#allocation7 + $0x34] sm:$0xf]
        %v533 = vld [vmem:[#allocation7 + $0x38] sm:$0xf]
        %v534 = vld [vmem:[#allocation7 + $0x3c] sm:$0xf]
        %v535 = vunpack.c.l.bf16 %v519
        %v536 = vunpack.c.l.bf16 %v520
        %v537 = vunpack.c.l.bf16 %v521
        %v538 = vunpack.c.l.bf16 %v522
        %v539 = vunpack.c.l.bf16 %v523
        %v540 = vunpack.c.l.bf16 %v524
        %v541 = vunpack.c.l.bf16 %v525
        %v542 = vunpack.c.l.bf16 %v526
        %v543 = vunpack.c.l.bf16 %v527
        %v544 = vunpack.c.l.bf16 %v528
        %v545 = vunpack.c.l.bf16 %v529
        %v546 = vunpack.c.l.bf16 %v530
        %v547 = vunpack.c.l.bf16 %v531
        %v548 = vunpack.c.l.bf16 %v532
        %v549 = vunpack.c.l.bf16 %v533
        %v550 = vunpack.c.l.bf16 %v534
        %v551 = vld [vmem:[%s4] sm:$0x1]
        %v553 = vlaneseq
        %v554 = vshrl.u32 %v553, 7
        %v555 = vsub.s32 0, %v554
        %v556 = vrot.slane %v551, %v555
        %558 = vmatprep.subr.mxu0 0.0
        %559 = vmatpush1.msra.mxu0 %v550
        %560 = vmatprep.subr.mxu0 0.0
        %561 = vmatpush1.msra.mxu0 %v549
        %562 = vmatprep.subr.mxu0 0.0
        %563 = vmatpush1.msra.mxu0 %v548
        %564 = vmatprep.subr.mxu0 0.0
        %565 = vmatpush1.msra.mxu0 %v547
        %566 = vmatprep.subr.mxu0 0.0
        %567 = vmatpush1.msra.mxu0 %v546
        %568 = vmatprep.subr.mxu0 0.0
        %569 = vmatpush1.msra.mxu0 %v545
        %570 = vmatprep.subr.mxu0 0.0
        %571 = vmatpush1.msra.mxu0 %v544
        %572 = vmatprep.subr.mxu0 0.0
        %573 = vmatpush1.msra.mxu0 %v543
        %574 = vmatprep.subr.mxu0 0.0
        %575 = vmatpush1.msra.mxu0 %v542
        %576 = vmatprep.subr.mxu0 0.0
        %577 = vmatpush1.msra.mxu0 %v541
        %578 = vmatprep.subr.mxu0 0.0
        %579 = vmatpush1.msra.mxu0 %v540
        %580 = vmatprep.subr.mxu0 0.0
        %581 = vmatpush1.msra.mxu0 %v539
        %582 = vmatprep.subr.mxu0 0.0
        %583 = vmatpush1.msra.mxu0 %v538
        %584 = vmatprep.subr.mxu0 0.0
        %585 = vmatpush1.msra.mxu0 %v537
        %586 = vmatprep.subr.mxu0 0.0
        %587 = vmatpush1.msra.mxu0 %v536
        %588 = vmatprep.subr.mxu0 0.0
        %589 = vmatpush1.msra.mxu0 %v535
        %590 = vmatprep.subr.mxu0 0.0
        %591 = vmatpush2.msra.mxu0 0.0
        %592 = vmatprep.subr.mxu0 0.0
        %593 = vmatpush2.msra.mxu0 0.0
        %594 = vmatprep.subr.mxu0 0.0
        %595 = vmatpush2.msra.mxu0 0.0
        %596 = vmatprep.subr.mxu0 0.0
        %597 = vmatpush2.msra.mxu0 0.0
        %598 = vmatprep.subr.mxu0 0.0
        %599 = vmatpush2.msra.mxu0 0.0
        %600 = vmatprep.subr.mxu0 0.0
        %601 = vmatpush2.msra.mxu0 0.0
        %602 = vmatprep.subr.mxu0 0.0
        %603 = vmatpush2.msra.mxu0 0.0
        %604 = vmatprep.subr.mxu0 0.0
        %605 = vmatpush2.msra.mxu0 0.0
        %606 = vmatprep.subr.mxu0 0.0
        %607 = vmatpush2.msra.mxu0 0.0
        %608 = vmatprep.subr.mxu0 0.0
        %609 = vmatpush2.msra.mxu0 0.0
        %610 = vmatprep.subr.mxu0 0.0
        %611 = vmatpush2.msra.mxu0 0.0
        %612 = vmatprep.subr.mxu0 0.0
        %613 = vmatpush2.msra.mxu0 0.0
        %614 = vmatprep.subr.mxu0 0.0
        %615 = vmatpush2.msra.mxu0 0.0
        %616 = vmatprep.subr.mxu0 0.0
        %617 = vmatpush2.msra.mxu0 0.0
        %618 = vmatprep.subr.mxu0 0.0
        %619 = vmatpush2.msra.mxu0 0.0
        %620 = vmatprep.subr.mxu0 0.0
        %621 = vmatpush2.msra.mxu0 0.0
        %622 = vmatprep.mubr.f32.mxu0 0.0
        %623 = vmatmul.mubr.f32.gmra.mxu0 %v518
        %v624 = vpop.f32.mrf.mxu0
        %v625 = vadd.f32 %v556, %v624
        %v626 = vpop.f32.mrf.mxu0
        %627 = vdwg.mxu0
        %v628 = vmax.f32 %v625, 0.0
        %v629 = vadd.f32 %v628, %v518
        %v630 = vld [vmem:[#allocation8] sm:$0xf]
        %v631 = vld [vmem:[#allocation8 + $0x4] sm:$0xf]
        %v632 = vld [vmem:[#allocation8 + $0x8] sm:$0xf]
        %v633 = vld [vmem:[#allocation8 + $0xc] sm:$0xf]
        %v634 = vld [vmem:[#allocation8 + $0x10] sm:$0xf]
        %v635 = vld [vmem:[#allocation8 + $0x14] sm:$0xf]
        %v636 = vld [vmem:[#allocation8 + $0x18] sm:$0xf]
        %v637 = vld [vmem:[#allocation8 + $0x1c] sm:$0xf]
        %v638 = vld [vmem:[#allocation8 + $0x20] sm:$0xf]
        %v639 = vld [vmem:[#allocation8 + $0x24] sm:$0xf]
        %v640 = vld [vmem:[#allocation8 + $0x28] sm:$0xf]
        %v641 = vld [vmem:[#allocation8 + $0x2c] sm:$0xf]
        %v642 = vld [vmem:[#allocation8 + $0x30] sm:$0xf]
        %v643 = vld [vmem:[#allocation8 + $0x34] sm:$0xf]
        %v644 = vld [vmem:[#allocation8 + $0x38] sm:$0xf]
        %v645 = vld [vmem:[#allocation8 + $0x3c] sm:$0xf]
        %v646 = vunpack.c.l.bf16 %v630
        %v647 = vunpack.c.l.bf16 %v631
        %v648 = vunpack.c.l.bf16 %v632
        %v649 = vunpack.c.l.bf16 %v633
        %v650 = vunpack.c.l.bf16 %v634
        %v651 = vunpack.c.l.bf16 %v635
        %v652 = vunpack.c.l.bf16 %v636
        %v653 = vunpack.c.l.bf16 %v637
        %v654 = vunpack.c.l.bf16 %v638
        %v655 = vunpack.c.l.bf16 %v639
        %v656 = vunpack.c.l.bf16 %v640
        %v657 = vunpack.c.l.bf16 %v641
        %v658 = vunpack.c.l.bf16 %v642
        %v659 = vunpack.c.l.bf16 %v643
        %v660 = vunpack.c.l.bf16 %v644
        %v661 = vunpack.c.l.bf16 %v645
        %v662 = vld [vmem:[%s6] sm:$0x1]
        %v664 = vlaneseq
        %v665 = vshrl.u32 %v664, 7
        %v666 = vsub.s32 0, %v665
        %v667 = vrot.slane %v662, %v666
        %669 = vmatprep.subr.mxu0 0.0
        %670 = vmatpush1.msra.mxu0 %v661
        %671 = vmatprep.subr.mxu0 0.0
        %672 = vmatpush1.msra.mxu0 %v660
        %673 = vmatprep.subr.mxu0 0.0
        %674 = vmatpush1.msra.mxu0 %v659
        %675 = vmatprep.subr.mxu0 0.0
        %676 = vmatpush1.msra.mxu0 %v658
        %677 = vmatprep.subr.mxu0 0.0
        %678 = vmatpush1.msra.mxu0 %v657
        %679 = vmatprep.subr.mxu0 0.0
        %680 = vmatpush1.msra.mxu0 %v656
        %681 = vmatprep.subr.mxu0 0.0
        %682 = vmatpush1.msra.mxu0 %v655
        %683 = vmatprep.subr.mxu0 0.0
        %684 = vmatpush1.msra.mxu0 %v654
        %685 = vmatprep.subr.mxu0 0.0
        %686 = vmatpush1.msra.mxu0 %v653
        %687 = vmatprep.subr.mxu0 0.0
        %688 = vmatpush1.msra.mxu0 %v652
        %689 = vmatprep.subr.mxu0 0.0
        %690 = vmatpush1.msra.mxu0 %v651
        %691 = vmatprep.subr.mxu0 0.0
        %692 = vmatpush1.msra.mxu0 %v650
        %693 = vmatprep.subr.mxu0 0.0
        %694 = vmatpush1.msra.mxu0 %v649
        %695 = vmatprep.subr.mxu0 0.0
        %696 = vmatpush1.msra.mxu0 %v648
        %697 = vmatprep.subr.mxu0 0.0
        %698 = vmatpush1.msra.mxu0 %v647
        %699 = vmatprep.subr.mxu0 0.0
        %700 = vmatpush1.msra.mxu0 %v646
        %701 = vmatprep.subr.mxu0 0.0
        %702 = vmatpush2.msra.mxu0 0.0
        %703 = vmatprep.subr.mxu0 0.0
        %704 = vmatpush2.msra.mxu0 0.0
        %705 = vmatprep.subr.mxu0 0.0
        %706 = vmatpush2.msra.mxu0 0.0
        %707 = vmatprep.subr.mxu0 0.0
        %708 = vmatpush2.msra.mxu0 0.0
        %709 = vmatprep.subr.mxu0 0.0
        %710 = vmatpush2.msra.mxu0 0.0
        %711 = vmatprep.subr.mxu0 0.0
        %712 = vmatpush2.msra.mxu0 0.0
        %713 = vmatprep.subr.mxu0 0.0
        %714 = vmatpush2.msra.mxu0 0.0
        %715 = vmatprep.subr.mxu0 0.0
        %716 = vmatpush2.msra.mxu0 0.0
        %717 = vmatprep.subr.mxu0 0.0
        %718 = vmatpush2.msra.mxu0 0.0
        %719 = vmatprep.subr.mxu0 0.0
        %720 = vmatpush2.msra.mxu0 0.0
        %721 = vmatprep.subr.mxu0 0.0
        %722 = vmatpush2.msra.mxu0 0.0
        %723 = vmatprep.subr.mxu0 0.0
        %724 = vmatpush2.msra.mxu0 0.0
        %725 = vmatprep.subr.mxu0 0.0
        %726 = vmatpush2.msra.mxu0 0.0
        %727 = vmatprep.subr.mxu0 0.0
        %728 = vmatpush2.msra.mxu0 0.0
        %729 = vmatprep.subr.mxu0 0.0
        %730 = vmatpush2.msra.mxu0 0.0
        %731 = vmatprep.subr.mxu0 0.0
        %732 = vmatpush2.msra.mxu0 0.0
        %733 = vmatprep.mubr.f32.mxu0 0.0
        %734 = vmatmul.mubr.f32.gmra.mxu0 %v629
        %v735 = vpop.f32.mrf.mxu0
        %v736 = vadd.f32 %v667, %v735
        %v737 = vpop.f32.mrf.mxu0
        %738 = vdwg.mxu0
        %v739 = vmax.f32 %v736, 0.0
        %v740 = vadd.f32 %v739, %v629
        %v741 = vld [vmem:[#allocation10] sm:$0xf]
        %v742 = vld [vmem:[#allocation10 + $0x4] sm:$0xf]
        %v743 = vld [vmem:[#allocation10 + $0x8] sm:$0xf]
        %v744 = vld [vmem:[#allocation10 + $0xc] sm:$0xf]
        %v745 = vld [vmem:[#allocation10 + $0x10] sm:$0xf]
        %v746 = vld [vmem:[#allocation10 + $0x14] sm:$0xf]
        %v747 = vld [vmem:[#allocation10 + $0x18] sm:$0xf]
        %v748 = vld [vmem:[#allocation10 + $0x1c] sm:$0xf]
        %v749 = vld [vmem:[#allocation10 + $0x20] sm:$0xf]
        %v750 = vld [vmem:[#allocation10 + $0x24] sm:$0xf]
        %v751 = vld [vmem:[#allocation10 + $0x28] sm:$0xf]
        %v752 = vld [vmem:[#allocation10 + $0x2c] sm:$0xf]
        %v753 = vld [vmem:[#allocation10 + $0x30] sm:$0xf]
        %v754 = vld [vmem:[#allocation10 + $0x34] sm:$0xf]
        %v755 = vld [vmem:[#allocation10 + $0x38] sm:$0xf]
        %v756 = vld [vmem:[#allocation10 + $0x3c] sm:$0xf]
        %v757 = vunpack.c.l.bf16 %v741
        %v758 = vunpack.c.l.bf16 %v742
        %v759 = vunpack.c.l.bf16 %v743
        %v760 = vunpack.c.l.bf16 %v744
        %v761 = vunpack.c.l.bf16 %v745
        %v762 = vunpack.c.l.bf16 %v746
        %v763 = vunpack.c.l.bf16 %v747
        %v764 = vunpack.c.l.bf16 %v748
        %v765 = vunpack.c.l.bf16 %v749
        %v766 = vunpack.c.l.bf16 %v750
        %v767 = vunpack.c.l.bf16 %v751
        %v768 = vunpack.c.l.bf16 %v752
        %v769 = vunpack.c.l.bf16 %v753
        %v770 = vunpack.c.l.bf16 %v754
        %v771 = vunpack.c.l.bf16 %v755
        %v772 = vunpack.c.l.bf16 %v756
        %v773 = vld [vmem:[%s8] sm:$0x1]
        %v775 = vlaneseq
        %v776 = vshrl.u32 %v775, 7
        %v777 = vsub.s32 0, %v776
        %v778 = vrot.slane %v773, %v777
        %780 = vmatprep.subr.mxu0 0.0
        %781 = vmatpush1.msra.mxu0 %v772
        %782 = vmatprep.subr.mxu0 0.0
        %783 = vmatpush1.msra.mxu0 %v771
        %784 = vmatprep.subr.mxu0 0.0
        %785 = vmatpush1.msra.mxu0 %v770
        %786 = vmatprep.subr.mxu0 0.0
        %787 = vmatpush1.msra.mxu0 %v769
        %788 = vmatprep.subr.mxu0 0.0
        %789 = vmatpush1.msra.mxu0 %v768
        %790 = vmatprep.subr.mxu0 0.0
        %791 = vmatpush1.msra.mxu0 %v767
        %792 = vmatprep.subr.mxu0 0.0
        %793 = vmatpush1.msra.mxu0 %v766
        %794 = vmatprep.subr.mxu0 0.0
        %795 = vmatpush1.msra.mxu0 %v765
        %796 = vmatprep.subr.mxu0 0.0
        %797 = vmatpush1.msra.mxu0 %v764
        %798 = vmatprep.subr.mxu0 0.0
        %799 = vmatpush1.msra.mxu0 %v763
        %800 = vmatprep.subr.mxu0 0.0
        %801 = vmatpush1.msra.mxu0 %v762
        %802 = vmatprep.subr.mxu0 0.0
        %803 = vmatpush1.msra.mxu0 %v761
        %804 = vmatprep.subr.mxu0 0.0
        %805 = vmatpush1.msra.mxu0 %v760
        %806 = vmatprep.subr.mxu0 0.0
        %807 = vmatpush1.msra.mxu0 %v759
        %808 = vmatprep.subr.mxu0 0.0
        %809 = vmatpush1.msra.mxu0 %v758
        %810 = vmatprep.subr.mxu0 0.0
        %811 = vmatpush1.msra.mxu0 %v757
        %812 = vmatprep.subr.mxu0 0.0
        %813 = vmatpush2.msra.mxu0 0.0
        %814 = vmatprep.subr.mxu0 0.0
        %815 = vmatpush2.msra.mxu0 0.0
        %816 = vmatprep.subr.mxu0 0.0
        %817 = vmatpush2.msra.mxu0 0.0
        %818 = vmatprep.subr.mxu0 0.0
        %819 = vmatpush2.msra.mxu0 0.0
        %820 = vmatprep.subr.mxu0 0.0
        %821 = vmatpush2.msra.mxu0 0.0
        %822 = vmatprep.subr.mxu0 0.0
        %823 = vmatpush2.msra.mxu0 0.0
        %824 = vmatprep.subr.mxu0 0.0
        %825 = vmatpush2.msra.mxu0 0.0
        %826 = vmatprep.subr.mxu0 0.0
        %827 = vmatpush2.msra.mxu0 0.0
        %828 = vmatprep.subr.mxu0 0.0
        %829 = vmatpush2.msra.mxu0 0.0
        %830 = vmatprep.subr.mxu0 0.0
        %831 = vmatpush2.msra.mxu0 0.0
        %832 = vmatprep.subr.mxu0 0.0
        %833 = vmatpush2.msra.mxu0 0.0
        %834 = vmatprep.subr.mxu0 0.0
        %835 = vmatpush2.msra.mxu0 0.0
        %836 = vmatprep.subr.mxu0 0.0
        %837 = vmatpush2.msra.mxu0 0.0
        %838 = vmatprep.subr.mxu0 0.0
        %839 = vmatpush2.msra.mxu0 0.0
        %840 = vmatprep.subr.mxu0 0.0
        %841 = vmatpush2.msra.mxu0 0.0
        %842 = vmatprep.subr.mxu0 0.0
        %843 = vmatpush2.msra.mxu0 0.0
        %844 = vmatprep.mubr.f32.mxu0 0.0
        %845 = vmatmul.mubr.f32.gmra.mxu0 %v740
        %v846 = vpop.f32.mrf.mxu0
        %v847 = vadd.f32 %v778, %v846
        %v848 = vpop.f32.mrf.mxu0
        %849 = vdwg.mxu0
        %850 = vst [vmem:[%s405] sm:$0xff] %v847
        %s851 = sand.u32 %s230, 1
        %s852 = scalar_lea.sflag [#allocation4], %s851
        %s853 = sand.u32 %s230, 1
        %s854 = smul.addr %s853, 8
        %s855 = scalar_lea.vmem [#allocation11], %s854
        // Predicated region
        $region77: #{tpu_custom_call.1} parent=55 // pred_check
          %p856 = pneg %p240
        $region78: #{tpu_custom_call.1} parent=55 // pred_check_branch
          %858 = sbr.rel (%p856) target = $region80
        $region79: #{tpu_custom_call.1} parent=55 // pred_region
          %s860 = ssub.s32 128, 128
          %861 = vsyncadd %s852, %s860
          %s862 = smul.addr %s28, 128
          %s863 = scalar_lea.hbm %s9, %s862
          %s865 = sshll.u32 %s855, 4
          %s866 = int_to_ptr.vmem [resolvable:$true] %s865
          %868 = dma.vmem_to_hbm [thread:$0]  %s866, 128, %s863, %s852
        $region80: #{tpu_custom_call.1} parent=55 // pred_fallthru
          _
      $region56: #{tpu_custom_call.1} parent=5 // pred_fallthru
        _
      %p869 = scmp.le.s32.totalorder 2, %s23
      // Predicated region
      $region81: #{tpu_custom_call.1} parent=5 // pred_check
        %p870 = pneg %p869
      $region82: #{tpu_custom_call.1} parent=5 // pred_check_branch
        %872 = sbr.rel (%p870) target = $region84
      $region83: #{tpu_custom_call.1} parent=5 // pred_region
        %s873 = ssub.s32 %s23, 2
        // Predicated region
        $region85: #{tpu_custom_call.1} parent=83 // pred_check
          %p874 = pneg %p246
        $region86: #{tpu_custom_call.1} parent=83 // pred_check_branch
          %876 = sbr.rel (%p874) target = $region88
        $region87: #{tpu_custom_call.1} parent=83 // pred_region
          %s877 = sand.u32 %s231, 1
          %s878 = scalar_lea.sflag [#allocation4], %s877
          %s879 = sand.u32 %s231, 1
          %s880 = smul.addr %s879, 8
          %s881 = scalar_lea.vmem [#allocation11], %s880
          %882 = dma.done %s878, 128
        $region88: #{tpu_custom_call.1} parent=83 // pred_fallthru
          _
      $region84: #{tpu_custom_call.1} parent=5 // pred_fallthru
        _
    $region6: #{tpu_custom_call.1} parent=1 // loop_footer
      %s27 = sadd.s32 1, %s23
    $region7: #{tpu_custom_call.1} parent=1 // loop_footer_branch
      %22 = sbr.rel target = $region3
    $region8: #{tpu_custom_call.1} parent=1 // loop_exit
      _
    %883 = vsyncpa [#allocation3], 1
    %s884 = scalar_lea.sflag [#allocation3], 1
    %885 = vsyncpa %s884, 1
    %886 = vsyncpa [#allocation6], 1
    %887 = vsyncpa [#allocation9], 1
    %888 = vsyncpa [#allocation4], 1
    %s889 = scalar_lea.sflag [#allocation4], 1
    %890 = vsyncpa %s889, 1

// kernel: tpu_custom_call.1
$region0: #{tpu_custom_call.1}
  #allocation0 [shape = 'u32[]', space=smem, size = 0x4, offset = 0x4, fixed_abs, tag = 'smem constant byte address 0x4 - core index']
  #allocation1 [shape = 'u32[144,128]{1,0:T(1,128)}', space=vmem, size = 0x12000, scoped, tag = 'internal scratch']
  %s0 = inlined_call_operand.hbm [shape: bf16[24,128], index: 0, kind: input, shape index: {}]
  %s1 = inlined_call_operand.hbm [shape: bf16[128,128], index: 1, kind: input, shape index: {}]
  %s2 = inlined_call_operand.vmem [shape: f32[1,128], index: 2, kind: input, shape index: {}]
  %s3 = inlined_call_operand.hbm [shape: bf16[128,128], index: 3, kind: input, shape index: {}]
  %s4 = inlined_call_operand.vmem [shape: f32[1,128], index: 4, kind: input, shape index: {}]
  %s5 = inlined_call_operand.hbm [shape: bf16[128,128], index: 5, kind: input, shape index: {}]
  %s6 = inlined_call_operand.vmem [shape: f32[1,128], index: 6, kind: input, shape index: {}]
  %s7 = inlined_call_operand.hbm [shape: bf16[128,128], index: 7, kind: input, shape index: {}]
  %s8 = inlined_call_operand.vmem [shape: f32[1,128], index: 8, kind: input, shape index: {}]
  %s9 = inlined_call_operand.hbm [shape: f32[24,128], index: 9, kind: output, shape index: {}]
  %s10 = sld [smem:[#allocation0]]
  $region89: #{tpu_custom_call.1} parent=0
    _
  %s12 = ssub.s32 1, %s10
  %s13 = scalar_select 0, %s12, %s10
  $region1: #{tpu_custom_call.1} parent=0
    #allocation2 [shape = 'u8[4096]{0}', space=vmem, size = 0x1000, scoped, tag = 'input window, operand 0']
    #allocation3 [shape = 's32[2]{0}', space=sflag, size = 0x8, scoped, tag = 'scoped memory for tpu_custom_call.1']
    #allocation4 [shape = 's32[2]{0}', space=sflag, size = 0x8, scoped, tag = 'scoped memory for tpu_custom_call.1']
    #allocation5 [shape = 'u8[32768]{0}', space=vmem, size = 0x8000, scoped, tag = 'input window, operand 1, single buffered']
    #allocation6 [shape = 's32[1]{0}', space=sflag, size = 0x4, scoped, tag = 'scoped memory for tpu_custom_call.1']
    #allocation7 [shape = 'u8[32768]{0}', space=vmem, size = 0x8000, scoped, tag = 'input window, operand 3, single buffered']
    #allocation8 [shape = 'u8[32768]{0}', space=vmem, size = 0x8000, scoped, tag = 'input window, operand 5, single buffered']
    #allocation9 [shape = 's32[1]{0}', space=sflag, size = 0x4, scoped, tag = 'scoped memory for tpu_custom_call.1']
    #allocation10 [shape = 'u8[32768]{0}', space=vmem, size = 0x8000, scoped, tag = 'input window, operand 7, single buffered']
    #allocation11 [shape = 'u8[8192]{0}', space=vmem, size = 0x2000, scoped, tag = 'output window, operand 0']
    %14 = vsyncpa [#allocation3], 0
    %s15 = scalar_lea.sflag [#allocation3], 1
    %16 = vsyncpa %s15, 0
    %17 = vsyncpa [#allocation6], 0
    %18 = vsyncpa [#allocation9], 0
    %19 = vsyncpa [#allocation4], 0
    %s20 = scalar_lea.sflag [#allocation4], 1
    %21 = vsyncpa %s20, 0
    loop: start=0, step=1, limit=5
    $region2: #{tpu_custom_call.1} parent=1 // loop_pre_header
      _
    $region3: #{tpu_custom_call.1} parent=1 // loop_header
      %s23 = sphi 0, %s27
      %p24 = scmp.ge.s32.totalorder %s23, 5
      %s33 = sphi 0, %s35
      %s36 = sphi 0, %s33
      %s37 = sphi 0, %s36
      %s53 = sphi 0, %s37
      %s57 = sphi 0, %s57
      %s59 = sphi 0, %s57
      %s60 = sphi 0, %s59
      %s74 = sphi 0, %s60
      %s78 = sphi 0, %s78
      %s80 = sphi 0, %s78
      %s81 = sphi 0, %s80
      %s95 = sphi 0, %s81
      %s99 = sphi 0, %s99
      %s101 = sphi 0, %s99
      %s102 = sphi 0, %s101
      %s116 = sphi 0, %s102
      %s120 = sphi 0, %s120
      %s122 = sphi 0, %s120
      %s123 = sphi 0, %s122
      %s137 = sphi 0, %s123
      %s141 = sphi 0, %s141
      %s143 = sphi 0, %s141
      %s144 = sphi 0, %s143
      %s158 = sphi 0, %s144
      %s162 = sphi 0, %s162
      %s164 = sphi 0, %s162
      %s165 = sphi 0, %s164
      %s179 = sphi 0, %s165
      %s183 = sphi 0, %s183
      %s185 = sphi 0, %s183
      %s186 = sphi 0, %s185
      %s200 = sphi 0, %s186
      %s204 = sphi 0, %s204
      %s206 = sphi 0, %s204
      %s207 = sphi 0, %s206
      %s221 = sphi 0, %s207
      %s227 = sphi 0, %s229
      %s230 = sphi 0, %s227
      %s231 = sphi 0, %s230
      %s247 = sphi 0, %s231
    $region4: #{tpu_custom_call.1} parent=1 // loop_header_branch
      %26 = sbr.rel (%p24) target = $region8
    $region5: #{tpu_custom_call.1} parent=1 // loop_body
      %s28 = ssub.s32 %s23, 1
      %s29 = ssub.s32 %s23, 2
      %s30 = sadd.s32 %s23, 1
      %s31 = ssub.s32 %s23, %s30
      %p32 = scmp.eq.s32.totalorder %s31, 0
      %s34 = sadd.s32 %s33, 1
      %s35 = scalar_select %p32, %s33, %s34
      %p38 = pneg %p32
      %p39 = scmp.eq.s32.totalorder %s23, 2
      %p40 = por %p38, %p39
      %p41 = scmp.ne.s32.totalorder %s33, %s36
      %p42 = scmp.eq.s32.totalorder %s23, 0
      %p43 = por %p41, %p42
      %p44 = scmp.ne.s32.totalorder %s33, %s36
      %p45 = scmp.eq.s32.totalorder %s28, 2
      %p46 = por %p44, %p45
      %p47 = scmp.ne.s32.totalorder %s36, %s37
      %p48 = scmp.eq.s32.totalorder %s28, 0
      %p49 = por %p47, %p48
      %p50 = scmp.ne.s32.totalorder %s36, %s37
      %p51 = scmp.eq.s32.totalorder %s29, 2
      %p52 = por %p50, %p51
      %p54 = scmp.ne.s32.totalorder %s37, %s53
      %p55 = scmp.eq.s32.totalorder %s29, 0
      %p56 = por %p54, %p55
      %s58 = sadd.s32 %s57, 1
      %p61 = scmp.eq.s32.totalorder %s23, 2
      %p62 = scmp.ne.s32.totalorder %s57, %s59
      %p63 = scmp.eq.s32.totalorder %s23, 0
      %p64 = por %p62, %p63
      %p65 = scmp.ne.s32.totalorder %s57, %s59
      %p66 = scmp.eq.s32.totalorder %s28, 2
      %p67 = por %p65, %p66
      %p68 = scmp.ne.s32.totalorder %s59, %s60
      %p69 = scmp.eq.s32.totalorder %s28, 0
      %p70 = por %p68, %p69
      %p71 = scmp.ne.s32.totalorder %s59, %s60
      %p72 = scmp.eq.s32.totalorder %s29, 2
      %p73 = por %p71, %p72
      %p75 = scmp.ne.s32.totalorder %s60, %s74
      %p76 = scmp.eq.s32.totalorder %s29, 0
      %p77 = por %p75, %p76
      %s79 = sadd.s32 %s78, 1
      %p82 = scmp.eq.s32.totalorder %s23, 2
      %p83 = scmp.ne.s32.totalorder %s78, %s80
      %p84 = scmp.eq.s32.totalorder %s23, 0
      %p85 = por %p83, %p84
      %p86 = scmp.ne.s32.totalorder %s78, %s80
      %p87 = scmp.eq.s32.totalorder %s28, 2
      %p88 = por %p86, %p87
      %p89 = scmp.ne.s32.totalorder %s80, %s81
      %p90 = scmp.eq.s32.totalorder %s28, 0
      %p91 = por %p89, %p90
      %p92 = scmp.ne.s32.totalorder %s80, %s81
      %p93 = scmp.eq.s32.totalorder %s29, 2
      %p94 = por %p92, %p93
      %p96 = scmp.ne.s32.totalorder %s81, %s95
      %p97 = scmp.eq.s32.totalorder %s29, 0
      %p98 = por %p96, %p97
      %s100 = sadd.s32 %s99, 1
      %p103 = scmp.eq.s32.totalorder %s23, 2
      %p104 = scmp.ne.s32.totalorder %s99, %s101
      %p105 = scmp.eq.s32.totalorder %s23, 0
      %p106 = por %p104, %p105
      %p107 = scmp.ne.s32.totalorder %s99, %s101
      %p108 = scmp.eq.s32.totalorder %s28, 2
      %p109 = por %p107, %p108
      %p110 = scmp.ne.s32.totalorder %s101, %s102
      %p111 = scmp.eq.s32.totalorder %s28, 0
      %p112 = por %p110, %p111
      %p113 = scmp.ne.s32.totalorder %s101, %s102
      %p114 = scmp.eq.s32.totalorder %s29, 2
      %p115 = por %p113, %p114
      %p117 = scmp.ne.s32.totalorder %s102, %s116
      %p118 = scmp.eq.s32.totalorder %s29, 0
      %p119 = por %p117, %p118
      %s121 = sadd.s32 %s120, 1
      %p124 = scmp.eq.s32.totalorder %s23, 2
      %p125 = scmp.ne.s32.totalorder %s120, %s122
      %p126 = scmp.eq.s32.totalorder %s23, 0
      %p127 = por %p125, %p126
      %p128 = scmp.ne.s32.totalorder %s120, %s122
      %p129 = scmp.eq.s32.totalorder %s28, 2
      %p130 = por %p128, %p129
      %p131 = scmp.ne.s32.totalorder %s122, %s123
      %p132 = scmp.eq.s32.totalorder %s28, 0
      %p133 = por %p131, %p132
      %p134 = scmp.ne.s32.totalorder %s122, %s123
      %p135 = scmp.eq.s32.totalorder %s29, 2
      %p136 = por %p134, %p135
      %p138 = scmp.ne.s32.totalorder %s123, %s137
      %p139 = scmp.eq.s32.totalorder %s29, 0
      %p140 = por %p138, %p139
      %s142 = sadd.s32 %s141, 1
      %p145 = scmp.eq.s32.totalorder %s23, 2
      %p146 = scmp.ne.s32.totalorder %s141, %s143
      %p147 = scmp.eq.s32.totalorder %s23, 0
      %p148 = por %p146, %p147
      %p149 = scmp.ne.s32.totalorder %s141, %s143
      %p150 = scmp.eq.s32.totalorder %s28, 2
      %p151 = por %p149, %p150
      %p152 = scmp.ne.s32.totalorder %s143, %s144
      %p153 = scmp.eq.s32.totalorder %s28, 0
      %p154 = por %p152, %p153
      %p155 = scmp.ne.s32.totalorder %s143, %s144
      %p156 = scmp.eq.s32.totalorder %s29, 2
      %p157 = por %p155, %p156
      %p159 = scmp.ne.s32.totalorder %s144, %s158
      %p160 = scmp.eq.s32.totalorder %s29, 0
      %p161 = por %p159, %p160
      %s163 = sadd.s32 %s162, 1
      %p166 = scmp.eq.s32.totalorder %s23, 2
      %p167 = scmp.ne.s32.totalorder %s162, %s164
      %p168 = scmp.eq.s32.totalorder %s23, 0
      %p169 = por %p167, %p168
      %p170 = scmp.ne.s32.totalorder %s162, %s164
      %p171 = scmp.eq.s32.totalorder %s28, 2
      %p172 = por %p170, %p171
      %p173 = scmp.ne.s32.totalorder %s164, %s165
      %p174 = scmp.eq.s32.totalorder %s28, 0
      %p175 = por %p173, %p174
      %p176 = scmp.ne.s32.totalorder %s164, %s165
      %p177 = scmp.eq.s32.totalorder %s29, 2
      %p178 = por %p176, %p177
      %p180 = scmp.ne.s32.totalorder %s165, %s179
      %p181 = scmp.eq.s32.totalorder %s29, 0
      %p182 = por %p180, %p181
      %s184 = sadd.s32 %s183, 1
      %p187 = scmp.eq.s32.totalorder %s23, 2
      %p188 = scmp.ne.s32.totalorder %s183, %s185
      %p189 = scmp.eq.s32.totalorder %s23, 0
      %p190 = por %p188, %p189
      %p191 = scmp.ne.s32.totalorder %s183, %s185
      %p192 = scmp.eq.s32.totalorder %s28, 2
      %p193 = por %p191, %p192
      %p194 = scmp.ne.s32.totalorder %s185, %s186
      %p195 = scmp.eq.s32.totalorder %s28, 0
      %p196 = por %p194, %p195
      %p197 = scmp.ne.s32.totalorder %s185, %s186
      %p198 = scmp.eq.s32.totalorder %s29, 2
      %p199 = por %p197, %p198
      %p201 = scmp.ne.s32.totalorder %s186, %s200
      %p202 = scmp.eq.s32.totalorder %s29, 0
      %p203 = por %p201, %p202
      %s205 = sadd.s32 %s204, 1
      %p208 = scmp.eq.s32.totalorder %s23, 2
      %p209 = scmp.ne.s32.totalorder %s204, %s206
      %p210 = scmp.eq.s32.totalorder %s23, 0
      %p211 = por %p209, %p210
      %p212 = scmp.ne.s32.totalorder %s204, %s206
      %p213 = scmp.eq.s32.totalorder %s28, 2
      %p214 = por %p212, %p213
      %p215 = scmp.ne.s32.totalorder %s206, %s207
      %p216 = scmp.eq.s32.totalorder %s28, 0
      %p217 = por %p215, %p216
      %p218 = scmp.ne.s32.totalorder %s206, %s207
      %p219 = scmp.eq.s32.totalorder %s29, 2
      %p220 = por %p218, %p219
      %p222 = scmp.ne.s32.totalorder %s207, %s221
      %p223 = scmp.eq.s32.totalorder %s29, 0
      %p224 = por %p222, %p223
      %s225 = ssub.s32 %s23, %s30
      %p226 = scmp.eq.s32.totalorder %s225, 0
      %s228 = sadd.s32 %s227, 1
      %s229 = scalar_select %p226, %s227, %s228
      %p232 = pneg %p226
      %p233 = scmp.eq.s32.totalorder %s23, 2
      %p234 = por %p232, %p233
      %p235 = scmp.ne.s32.totalorder %s227, %s230
      %p236 = scmp.eq.s32.totalorder %s23, 0
      %p237 = por %p235, %p236
      %p238 = scmp.ne.s32.totalorder %s227, %s230
      %p239 = scmp.eq.s32.totalorder %s28, 2
      %p240 = por %p238, %p239
      %p241 = scmp.ne.s32.totalorder %s230, %s231
      %p242 = scmp.eq.s32.totalorder %s28, 0
      %p243 = por %p241, %p242
      %p244 = scmp.ne.s32.totalorder %s230, %s231
      %p245 = scmp.eq.s32.totalorder %s29, 2
      %p246 = por %p244, %p245
      %p248 = scmp.ne.s32.totalorder %s231, %s247
      %p249 = scmp.eq.s32.totalorder %s29, 0
      %p250 = por %p248, %p249
      %p251 = scmp.le.s32.totalorder 1, %s23
      %p252 = scmp.lt.s32.totalorder %s23, 4
      %p253 = pnand %p251, %p252
      %p254 = pneg %p253
      // Predicated region
      $region9: #{tpu_custom_call.1} parent=5 // pred_check
        _
      $region10: #{tpu_custom_call.1} parent=5 // pred_check_branch
        %256 = sbr.rel (%p253) target = $region12
      $region11: #{tpu_custom_call.1} parent=5 // pred_region
        %s257 = ssub.s32 %s23, 1
        // Predicated region
        $region13: #{tpu_custom_call.1} parent=11 // pred_check
          %p258 = pneg %p70
        $region14: #{tpu_custom_call.1} parent=11 // pred_check_branch
          %260 = sbr.rel (%p258) target = $region16
        $region15: #{tpu_custom_call.1} parent=11 // pred_region
          %s262 = ssub.s32 1024, 1024
          %263 = vsyncadd [#allocation6], %s262
          %s264 = sshll.u32 [#allocation5], 4
          %s265 = int_to_ptr.vmem [resolvable:$true] %s264
          %270 = dma.hbm_to_vmem [thread:$0]  %s1, 1024, %s265, [#allocation6], 64, 64, 4
        $region16: #{tpu_custom_call.1} parent=11 // pred_fallthru
          _
        // Predicated region
        $region17: #{tpu_custom_call.1} parent=11 // pred_check
          %p271 = pneg %p91
        $region18: #{tpu_custom_call.1} parent=11 // pred_check_branch
          %273 = sbr.rel (%p271) target = $region20
        $region19: #{tpu_custom_call.1} parent=11 // pred_region
          _
        $region20: #{tpu_custom_call.1} parent=11 // pred_fallthru
          _
        // Predicated region
        $region21: #{tpu_custom_call.1} parent=11 // pred_check
          %p274 = pneg %p112
        $region22: #{tpu_custom_call.1} parent=11 // pred_check_branch
          %276 = sbr.rel (%p274) target = $region24
        $region23: #{tpu_custom_call.1} parent=11 // pred_region
          %s278 = ssub.s32 1024, 1024
          %279 = vsyncadd [#allocation6], %s278
          %s280 = sshll.u32 [#allocation7], 4
          %s281 = int_to_ptr.vmem [resolvable:$true] %s280
          %286 = dma.hbm_to_vmem [thread:$0]  %s3, 1024, %s281, [#allocation6], 64, 64, 4
        $region24: #{tpu_custom_call.1} parent=11 // pred_fallthru
          _
        // Predicated region
        $region25: #{tpu_custom_call.1} parent=11 // pred_check
          %p287 = pneg %p133
        $region26: #{tpu_custom_call.1} parent=11 // pred_check_branch
          %289 = sbr.rel (%p287) target = $region28
        $region27: #{tpu_custom_call.1} parent=11 // pred_region
          _
        $region28: #{tpu_custom_call.1} parent=11 // pred_fallthru
          _
        // Predicated region
        $region29: #{tpu_custom_call.1} parent=11 // pred_check
          %p290 = pneg %p154
        $region30: #{tpu_custom_call.1} parent=11 // pred_check_branch
          %292 = sbr.rel (%p290) target = $region32
        $region31: #{tpu_custom_call.1} parent=11 // pred_region
          %s294 = ssub.s32 1024, 1024
          %295 = vsyncadd [#allocation9], %s294
          %s296 = sshll.u32 [#allocation8], 4
          %s297 = int_to_ptr.vmem [resolvable:$true] %s296
          %302 = dma.hbm_to_vmem [thread:$0]  %s5, 1024, %s297, [#allocation9], 64, 64, 4
        $region32: #{tpu_custom_call.1} parent=11 // pred_fallthru
          _
        // Predicated region
        $region33: #{tpu_custom_call.1} parent=11 // pred_check
          %p303 = pneg %p175
        $region34: #{tpu_custom_call.1} parent=11 // pred_check_branch
          %305 = sbr.rel (%p303) target = $region36
        $region35: #{tpu_custom_call.1} parent=11 // pred_region
          _
        $region36: #{tpu_custom_call.1} parent=11 // pred_fallthru
          _
        // Predicated region
        $region37: #{tpu_custom_call.1} parent=11 // pred_check
          %p306 = pneg %p196
        $region38: #{tpu_custom_call.1} parent=11 // pred_check_branch
          %308 = sbr.rel (%p306) target = $region40
        $region39: #{tpu_custom_call.1} parent=11 // pred_region
          %s310 = ssub.s32 1024, 1024
          %311 = vsyncadd [#allocation9], %s310
          %s312 = sshll.u32 [#allocation10], 4
          %s313 = int_to_ptr.vmem [resolvable:$true] %s312
          %318 = dma.hbm_to_vmem [thread:$0]  %s7, 1024, %s313, [#allocation9], 64, 64, 4
        $region40: #{tpu_custom_call.1} parent=11 // pred_fallthru
          _
        // Predicated region
        $region41: #{tpu_custom_call.1} parent=11 // pred_check
          %p319 = pneg %p217
        $region42: #{tpu_custom_call.1} parent=11 // pred_check_branch
          %321 = sbr.rel (%p319) target = $region44
        $region43: #{tpu_custom_call.1} parent=11 // pred_region
          _
        $region44: #{tpu_custom_call.1} parent=11 // pred_fallthru
          _
      $region12: #{tpu_custom_call.1} parent=5 // pred_fallthru
        _
      %p322 = scmp.lt.s32.totalorder %s23, 3
      // Predicated region
      $region45: #{tpu_custom_call.1} parent=5 // pred_check
        %p323 = pneg %p322
      $region46: #{tpu_custom_call.1} parent=5 // pred_check_branch
        %325 = sbr.rel (%p323) target = $region48
      $region47: #{tpu_custom_call.1} parent=5 // pred_region
        // Predicated region
        $region49: #{tpu_custom_call.1} parent=47 // pred_check
          %p326 = pneg %p43
        $region50: #{tpu_custom_call.1} parent=47 // pred_check_branch
          %328 = sbr.rel (%p326) target = $region52
        $region51: #{tpu_custom_call.1} parent=47 // pred_region
          %s329 = sand.u32 %s33, 1
          %s330 = scalar_lea.sflag [#allocation3], %s329
          %s331 = sand.u32 %s33, 1
          %s332 = smul.addr %s331, 4
          %s333 = scalar_lea.vmem [#allocation2], %s332
          %s335 = ssub.s32 64, 64
          %336 = vsyncadd %s330, %s335
          %s337 = smul.addr %s23, 64
          %s338 = scalar_lea.hbm %s0, %s337
          %s340 = sshll.u32 %s333, 4
          %s341 = int_to_ptr.vmem [resolvable:$true] %s340
          %343 = dma.hbm_to_vmem [thread:$0]  %s338, 64, %s341, %s330
        $region52: #{tpu_custom_call.1} parent=47 // pred_fallthru
          _
      $region48: #{tpu_custom_call.1} parent=5 // pred_fallthru
        _
      %p344 = scmp.le.s32.totalorder 1, %s23
      %p345 = scmp.lt.s32.totalorder %s23, 4
      %p346 = pnand %p344, %p345
      %p347 = pneg %p346
      // Predicated region
      $region53: #{tpu_custom_call.1} parent=5 // pred_check
        _
      $region54: #{tpu_custom_call.1} parent=5 // pred_check_branch
        %349 = sbr.rel (%p346) target = $region56
      $region55: #{tpu_custom_call.1} parent=5 // pred_region
        %s350 = ssub.s32 %s23, 1
        %s351 = sand.u32 %s36, 1
        %s352 = scalar_lea.sflag [#allocation3], %s351
        %s353 = sand.u32 %s36, 1
        %s354 = smul.addr %s353, 4
        %s355 = scalar_lea.vmem [#allocation2], %s354
        // Predicated region
        $region57: #{tpu_custom_call.1} parent=55 // pred_check
          %p356 = pneg %p49
        $region58: #{tpu_custom_call.1} parent=55 // pred_check_branch
          %358 = sbr.rel (%p356) target = $region60
        $region59: #{tpu_custom_call.1} parent=55 // pred_region
          %359 = dma.done %s352, 64
        $region60: #{tpu_custom_call.1} parent=55 // pred_fallthru
          _
        // Predicated region
        $region61: #{tpu_custom_call.1} parent=55 // pred_check
          %p360 = pneg %p70
        $region62: #{tpu_custom_call.1} parent=55 // pred_check_branch
          %362 = sbr.rel (%p360) target = $region64
        $region63: #{tpu_custom_call.1} parent=55 // pred_region
          %363 = dma.done [#allocation6], 1024
        $region64: #{tpu_custom_call.1} parent=55 // pred_fallthru
          _
        // Predicated region
        $region65: #{tpu_custom_call.1} parent=55 // pred_check
          %p364 = pneg %p112
        $region66: #{tpu_custom_call.1} parent=55 // pred_check_branch
          %366 = sbr.rel (%p364) target = $region68
        $region67: #{tpu_custom_call.1} parent=55 // pred_region
          %367 = dma.done [#allocation6], 1024
        $region68: #{tpu_custom_call.1} parent=55 // pred_fallthru
          _
        // Predicated region
        $region69: #{tpu_custom_call.1} parent=55 // pred_check
          %p368 = pneg %p154
        $region70: #{tpu_custom_call.1} parent=55 // pred_check_branch
          %370 = sbr.rel (%p368) target = $region72
        $region71: #{tpu_custom_call.1} parent=55 // pred_region
          %371 = dma.done [#allocation9], 1024
        $region72: #{tpu_custom_call.1} parent=55 // pred_fallthru
          _
        // Predicated region
        $region73: #{tpu_custom_call.1} parent=55 // pred_check
          %p372 = pneg %p196
        $region74: #{tpu_custom_call.1} parent=55 // pred_check_branch
          %374 = sbr.rel (%p372) target = $region76
        $region75: #{tpu_custom_call.1} parent=55 // pred_region
          %375 = dma.done [#allocation9], 1024
        $region76: #{tpu_custom_call.1} parent=55 // pred_fallthru
          _
        %s376 = sand.u32 %s36, 1
        %s377 = scalar_lea.sflag [#allocation3], %s376
        %s378 = sand.u32 %s36, 1
        %s379 = smul.addr %s378, 4
        %s380 = scalar_lea.vmem [#allocation2], %s379
        %p381 = pneg %p49
        %p382 = pneg %p46
        %p383 = pneg %p70
        %p384 = pneg %p67
        %p385 = pneg %p91
        %p386 = pneg %p88
        %p387 = pneg %p112
        %p388 = pneg %p109
        %p389 = pneg %p133
        %p390 = pneg %p130
        %p391 = pneg %p154
        %p392 = pneg %p151
        %p393 = pneg %p175
        %p394 = pneg %p172
        %p395 = pneg %p196
        %p396 = pneg %p193
        %p397 = pneg %p217
        %p398 = pneg %p214
        %p399 = pneg %p243
        %p400 = pneg %p240
        %s401 = sand.u32 %s230, 1
        %s402 = scalar_lea.sflag [#allocation4], %s401
        %s403 = sand.u32 %s230, 1
        %s404 = smul.addr %s403, 8
        %s405 = scalar_lea.vmem [#allocation11], %s404
        %v406 = vld [vmem:[%s355] sm:$0xf]
        %v407 = vunpack.c.l.bf16 %v406
        %v408 = vld [vmem:[#allocation5] sm:$0xf]
        %v409 = vld [vmem:[#allocation5 + $0x4] sm:$0xf]
        %v410 = vld [vmem:[#allocation5 + $0x8] sm:$0xf]
        %v411 = vld [vmem:[#allocation5 + $0xc] sm:$0xf]
        %v412 = vld [vmem:[#allocation5 + $0x10] sm:$0xf]
        %v413 = vld [vmem:[#allocation5 + $0x14] sm:$0xf]
        %v414 = vld [vmem:[#allocation5 + $0x18] sm:$0xf]
        %v415 = vld [vmem:[#allocation5 + $0x1c] sm:$0xf]
        %v416 = vld [vmem:[#allocation5 + $0x20] sm:$0xf]
        %v417 = vld [vmem:[#allocation5 + $0x24] sm:$0xf]
        %v418 = vld [vmem:[#allocation5 + $0x28] sm:$0xf]
        %v419 = vld [vmem:[#allocation5 + $0x2c] sm:$0xf]
        %v420 = vld [vmem:[#allocation5 + $0x30] sm:$0xf]
        %v421 = vld [vmem:[#allocation5 + $0x34] sm:$0xf]
        %v422 = vld [vmem:[#allocation5 + $0x38] sm:$0xf]
        %v423 = vld [vmem:[#allocation5 + $0x3c] sm:$0xf]
        %v424 = vunpack.c.l.bf16 %v408
        %v425 = vunpack.c.l.bf16 %v409
        %v426 = vunpack.c.l.bf16 %v410
        %v427 = vunpack.c.l.bf16 %v411
        %v428 = vunpack.c.l.bf16 %v412
        %v429 = vunpack.c.l.bf16 %v413
        %v430 = vunpack.c.l.bf16 %v414
        %v431 = vunpack.c.l.bf16 %v415
        %v432 = vunpack.c.l.bf16 %v416
        %v433 = vunpack.c.l.bf16 %v417
        %v434 = vunpack.c.l.bf16 %v418
        %v435 = vunpack.c.l.bf16 %v419
        %v436 = vunpack.c.l.bf16 %v420
        %v437 = vunpack.c.l.bf16 %v421
        %v438 = vunpack.c.l.bf16 %v422
        %v439 = vunpack.c.l.bf16 %v423
        %v440 = vld [vmem:[%s2] sm:$0x1]
        %v442 = vlaneseq
        %v443 = vshrl.u32 %v442, 7
        %v444 = vsub.s32 0, %v443
        %v445 = vrot.slane %v440, %v444
        %447 = vmatprep.subr.mxu0 0.0
        %448 = vmatpush1.msra.mxu0 %v439
        %449 = vmatprep.subr.mxu0 0.0
        %450 = vmatpush1.msra.mxu0 %v438
        %451 = vmatprep.subr.mxu0 0.0
        %452 = vmatpush1.msra.mxu0 %v437
        %453 = vmatprep.subr.mxu0 0.0
        %454 = vmatpush1.msra.mxu0 %v436
        %455 = vmatprep.subr.mxu0 0.0
        %456 = vmatpush1.msra.mxu0 %v435
        %457 = vmatprep.subr.mxu0 0.0
        %458 = vmatpush1.msra.mxu0 %v434
        %459 = vmatprep.subr.mxu0 0.0
        %460 = vmatpush1.msra.mxu0 %v433
        %461 = vmatprep.subr.mxu0 0.0
        %462 = vmatpush1.msra.mxu0 %v432
        %463 = vmatprep.subr.mxu0 0.0
        %464 = vmatpush1.msra.mxu0 %v431
        %465 = vmatprep.subr.mxu0 0.0
        %466 = vmatpush1.msra.mxu0 %v430
        %467 = vmatprep.subr.mxu0 0.0
        %468 = vmatpush1.msra.mxu0 %v429
        %469 = vmatprep.subr.mxu0 0.0
        %470 = vmatpush1.msra.mxu0 %v428
        %471 = vmatprep.subr.mxu0 0.0
        %472 = vmatpush1.msra.mxu0 %v427
        %473 = vmatprep.subr.mxu0 0.0
        %474 = vmatpush1.msra.mxu0 %v426
        %475 = vmatprep.subr.mxu0 0.0
        %476 = vmatpush1.msra.mxu0 %v425
        %477 = vmatprep.subr.mxu0 0.0
        %478 = vmatpush1.msra.mxu0 %v424
        %479 = vmatprep.subr.mxu0 0.0
        %480 = vmatpush2.msra.mxu0 0.0
        %481 = vmatprep.subr.mxu0 0.0
        %482 = vmatpush2.msra.mxu0 0.0
        %483 = vmatprep.subr.mxu0 0.0
        %484 = vmatpush2.msra.mxu0 0.0
        %485 = vmatprep.subr.mxu0 0.0
        %486 = vmatpush2.msra.mxu0 0.0
        %487 = vmatprep.subr.mxu0 0.0
        %488 = vmatpush2.msra.mxu0 0.0
        %489 = vmatprep.subr.mxu0 0.0
        %490 = vmatpush2.msra.mxu0 0.0
        %491 = vmatprep.subr.mxu0 0.0
        %492 = vmatpush2.msra.mxu0 0.0
        %493 = vmatprep.subr.mxu0 0.0
        %494 = vmatpush2.msra.mxu0 0.0
        %495 = vmatprep.subr.mxu0 0.0
        %496 = vmatpush2.msra.mxu0 0.0
        %497 = vmatprep.subr.mxu0 0.0
        %498 = vmatpush2.msra.mxu0 0.0
        %499 = vmatprep.subr.mxu0 0.0
        %500 = vmatpush2.msra.mxu0 0.0
        %501 = vmatprep.subr.mxu0 0.0
        %502 = vmatpush2.msra.mxu0 0.0
        %503 = vmatprep.subr.mxu0 0.0
        %504 = vmatpush2.msra.mxu0 0.0
        %505 = vmatprep.subr.mxu0 0.0
        %506 = vmatpush2.msra.mxu0 0.0
        %507 = vmatprep.subr.mxu0 0.0
        %508 = vmatpush2.msra.mxu0 0.0
        %509 = vmatprep.subr.mxu0 0.0
        %510 = vmatpush2.msra.mxu0 0.0
        %511 = vmatprep.mubr.f32.mxu0 0.0
        %512 = vmatmul.mubr.f32.gmra.mxu0 %v407
        %v513 = vpop.f32.mrf.mxu0
        %v514 = vadd.f32 %v445, %v513
        %v515 = vpop.f32.mrf.mxu0
        %516 = vdwg.mxu0
        %v517 = vmax.f32 %v514, 0.0
        %v518 = vadd.f32 %v517, %v407
        %v519 = vld [vmem:[#allocation7] sm:$0xf]
        %v520 = vld [vmem:[#allocation7 + $0x4] sm:$0xf]
        %v521 = vld [vmem:[#allocation7 + $0x8] sm:$0xf]
        %v522 = vld [vmem:[#allocation7 + $0xc] sm:$0xf]
        %v523 = vld [vmem:[#allocation7 + $0x10] sm:$0xf]
        %v524 = vld [vmem:[#allocation7 + $0x14] sm:$0xf]
        %v525 = vld [vmem:[#allocation7 + $0x18] sm:$0xf]
        %v526 = vld [vmem:[#allocation7 + $0x1c] sm:$0xf]
        %v527 = vld [vmem:[#allocation7 + $0x20] sm:$0xf]
        %v528 = vld [vmem:[#allocation7 + $0x24] sm:$0xf]
        %v529 = vld [vmem:[#allocation7 + $0x28] sm:$0xf]
        %v530 = vld [vmem:[#allocation7 + $0x2c] sm:$0xf]
        %v531 = vld [vmem:[#allocation7 + $0x30] sm:$0xf]
        %v532 = vld [vmem:[#allocation7 + $0x34] sm:$0xf]
        %v533 = vld [vmem:[#allocation7 + $0x38] sm:$0xf]
        %v534 = vld [vmem:[#allocation7 + $0x3c] sm:$0xf]
        %v535 = vunpack.c.l.bf16 %v519
        %v536 = vunpack.c.l.bf16 %v520
        %v537 = vunpack.c.l.bf16 %v521
        %v538 = vunpack.c.l.bf16 %v522
        %v539 = vunpack.c.l.bf16 %v523
        %v540 = vunpack.c.l.bf16 %v524
        %v541 = vunpack.c.l.bf16 %v525
        %v542 = vunpack.c.l.bf16 %v526
        %v543 = vunpack.c.l.bf16 %v527
        %v544 = vunpack.c.l.bf16 %v528
        %v545 = vunpack.c.l.bf16 %v529
        %v546 = vunpack.c.l.bf16 %v530
        %v547 = vunpack.c.l.bf16 %v531
        %v548 = vunpack.c.l.bf16 %v532
        %v549 = vunpack.c.l.bf16 %v533
        %v550 = vunpack.c.l.bf16 %v534
        %v551 = vld [vmem:[%s4] sm:$0x1]
        %v553 = vlaneseq
        %v554 = vshrl.u32 %v553, 7
        %v555 = vsub.s32 0, %v554
        %v556 = vrot.slane %v551, %v555
        %558 = vmatprep.subr.mxu0 0.0
        %559 = vmatpush1.msra.mxu0 %v550
        %560 = vmatprep.subr.mxu0 0.0
        %561 = vmatpush1.msra.mxu0 %v549
        %562 = vmatprep.subr.mxu0 0.0
        %563 = vmatpush1.msra.mxu0 %v548
        %564 = vmatprep.subr.mxu0 0.0
        %565 = vmatpush1.msra.mxu0 %v547
        %566 = vmatprep.subr.mxu0 0.0
        %567 = vmatpush1.msra.mxu0 %v546
        %568 = vmatprep.subr.mxu0 0.0
        %569 = vmatpush1.msra.mxu0 %v545
        %570 = vmatprep.subr.mxu0 0.0
        %571 = vmatpush1.msra.mxu0 %v544
        %572 = vmatprep.subr.mxu0 0.0
        %573 = vmatpush1.msra.mxu0 %v543
        %574 = vmatprep.subr.mxu0 0.0
        %575 = vmatpush1.msra.mxu0 %v542
        %576 = vmatprep.subr.mxu0 0.0
        %577 = vmatpush1.msra.mxu0 %v541
        %578 = vmatprep.subr.mxu0 0.0
        %579 = vmatpush1.msra.mxu0 %v540
        %580 = vmatprep.subr.mxu0 0.0
        %581 = vmatpush1.msra.mxu0 %v539
        %582 = vmatprep.subr.mxu0 0.0
        %583 = vmatpush1.msra.mxu0 %v538
        %584 = vmatprep.subr.mxu0 0.0
        %585 = vmatpush1.msra.mxu0 %v537
        %586 = vmatprep.subr.mxu0 0.0
        %587 = vmatpush1.msra.mxu0 %v536
        %588 = vmatprep.subr.mxu0 0.0
        %589 = vmatpush1.msra.mxu0 %v535
        %590 = vmatprep.subr.mxu0 0.0
        %591 = vmatpush2.msra.mxu0 0.0
        %592 = vmatprep.subr.mxu0 0.0
        %593 = vmatpush2.msra.mxu0 0.0
        %594 = vmatprep.subr.mxu0 0.0
        %595 = vmatpush2.msra.mxu0 0.0
        %596 = vmatprep.subr.mxu0 0.0
        %597 = vmatpush2.msra.mxu0 0.0
        %598 = vmatprep.subr.mxu0 0.0
        %599 = vmatpush2.msra.mxu0 0.0
        %600 = vmatprep.subr.mxu0 0.0
        %601 = vmatpush2.msra.mxu0 0.0
        %602 = vmatprep.subr.mxu0 0.0
        %603 = vmatpush2.msra.mxu0 0.0
        %604 = vmatprep.subr.mxu0 0.0
        %605 = vmatpush2.msra.mxu0 0.0
        %606 = vmatprep.subr.mxu0 0.0
        %607 = vmatpush2.msra.mxu0 0.0
        %608 = vmatprep.subr.mxu0 0.0
        %609 = vmatpush2.msra.mxu0 0.0
        %610 = vmatprep.subr.mxu0 0.0
        %611 = vmatpush2.msra.mxu0 0.0
        %612 = vmatprep.subr.mxu0 0.0
        %613 = vmatpush2.msra.mxu0 0.0
        %614 = vmatprep.subr.mxu0 0.0
        %615 = vmatpush2.msra.mxu0 0.0
        %616 = vmatprep.subr.mxu0 0.0
        %617 = vmatpush2.msra.mxu0 0.0
        %618 = vmatprep.subr.mxu0 0.0
        %619 = vmatpush2.msra.mxu0 0.0
        %620 = vmatprep.subr.mxu0 0.0
        %621 = vmatpush2.msra.mxu0 0.0
        %622 = vmatprep.mubr.f32.mxu0 0.0
        %623 = vmatmul.mubr.f32.gmra.mxu0 %v518
        %v624 = vpop.f32.mrf.mxu0
        %v625 = vadd.f32 %v556, %v624
        %v626 = vpop.f32.mrf.mxu0
        %627 = vdwg.mxu0
        %v628 = vmax.f32 %v625, 0.0
        %v629 = vadd.f32 %v628, %v518
        %v630 = vld [vmem:[#allocation8] sm:$0xf]
        %v631 = vld [vmem:[#allocation8 + $0x4] sm:$0xf]
        %v632 = vld [vmem:[#allocation8 + $0x8] sm:$0xf]
        %v633 = vld [vmem:[#allocation8 + $0xc] sm:$0xf]
        %v634 = vld [vmem:[#allocation8 + $0x10] sm:$0xf]
        %v635 = vld [vmem:[#allocation8 + $0x14] sm:$0xf]
        %v636 = vld [vmem:[#allocation8 + $0x18] sm:$0xf]
        %v637 = vld [vmem:[#allocation8 + $0x1c] sm:$0xf]
        %v638 = vld [vmem:[#allocation8 + $0x20] sm:$0xf]
        %v639 = vld [vmem:[#allocation8 + $0x24] sm:$0xf]
        %v640 = vld [vmem:[#allocation8 + $0x28] sm:$0xf]
        %v641 = vld [vmem:[#allocation8 + $0x2c] sm:$0xf]
        %v642 = vld [vmem:[#allocation8 + $0x30] sm:$0xf]
        %v643 = vld [vmem:[#allocation8 + $0x34] sm:$0xf]
        %v644 = vld [vmem:[#allocation8 + $0x38] sm:$0xf]
        %v645 = vld [vmem:[#allocation8 + $0x3c] sm:$0xf]
        %v646 = vunpack.c.l.bf16 %v630
        %v647 = vunpack.c.l.bf16 %v631
        %v648 = vunpack.c.l.bf16 %v632
        %v649 = vunpack.c.l.bf16 %v633
        %v650 = vunpack.c.l.bf16 %v634
        %v651 = vunpack.c.l.bf16 %v635
        %v652 = vunpack.c.l.bf16 %v636
        %v653 = vunpack.c.l.bf16 %v637
        %v654 = vunpack.c.l.bf16 %v638
        %v655 = vunpack.c.l.bf16 %v639
        %v656 = vunpack.c.l.bf16 %v640
        %v657 = vunpack.c.l.bf16 %v641
        %v658 = vunpack.c.l.bf16 %v642
        %v659 = vunpack.c.l.bf16 %v643
        %v660 = vunpack.c.l.bf16 %v644
        %v661 = vunpack.c.l.bf16 %v645
        %v662 = vld [vmem:[%s6] sm:$0x1]
        %v664 = vlaneseq
        %v665 = vshrl.u32 %v664, 7
        %v666 = vsub.s32 0, %v665
        %v667 = vrot.slane %v662, %v666
        %669 = vmatprep.subr.mxu0 0.0
        %670 = vmatpush1.msra.mxu0 %v661
        %671 = vmatprep.subr.mxu0 0.0
        %672 = vmatpush1.msra.mxu0 %v660
        %673 = vmatprep.subr.mxu0 0.0
        %674 = vmatpush1.msra.mxu0 %v659
        %675 = vmatprep.subr.mxu0 0.0
        %676 = vmatpush1.msra.mxu0 %v658
        %677 = vmatprep.subr.mxu0 0.0
        %678 = vmatpush1.msra.mxu0 %v657
        %679 = vmatprep.subr.mxu0 0.0
        %680 = vmatpush1.msra.mxu0 %v656
        %681 = vmatprep.subr.mxu0 0.0
        %682 = vmatpush1.msra.mxu0 %v655
        %683 = vmatprep.subr.mxu0 0.0
        %684 = vmatpush1.msra.mxu0 %v654
        %685 = vmatprep.subr.mxu0 0.0
        %686 = vmatpush1.msra.mxu0 %v653
        %687 = vmatprep.subr.mxu0 0.0
        %688 = vmatpush1.msra.mxu0 %v652
        %689 = vmatprep.subr.mxu0 0.0
        %690 = vmatpush1.msra.mxu0 %v651
        %691 = vmatprep.subr.mxu0 0.0
        %692 = vmatpush1.msra.mxu0 %v650
        %693 = vmatprep.subr.mxu0 0.0
        %694 = vmatpush1.msra.mxu0 %v649
        %695 = vmatprep.subr.mxu0 0.0
        %696 = vmatpush1.msra.mxu0 %v648
        %697 = vmatprep.subr.mxu0 0.0
        %698 = vmatpush1.msra.mxu0 %v647
        %699 = vmatprep.subr.mxu0 0.0
        %700 = vmatpush1.msra.mxu0 %v646
        %701 = vmatprep.subr.mxu0 0.0
        %702 = vmatpush2.msra.mxu0 0.0
        %703 = vmatprep.subr.mxu0 0.0
        %704 = vmatpush2.msra.mxu0 0.0
        %705 = vmatprep.subr.mxu0 0.0
        %706 = vmatpush2.msra.mxu0 0.0
        %707 = vmatprep.subr.mxu0 0.0
        %708 = vmatpush2.msra.mxu0 0.0
        %709 = vmatprep.subr.mxu0 0.0
        %710 = vmatpush2.msra.mxu0 0.0
        %711 = vmatprep.subr.mxu0 0.0
        %712 = vmatpush2.msra.mxu0 0.0
        %713 = vmatprep.subr.mxu0 0.0
        %714 = vmatpush2.msra.mxu0 0.0
        %715 = vmatprep.subr.mxu0 0.0
        %716 = vmatpush2.msra.mxu0 0.0
        %717 = vmatprep.subr.mxu0 0.0
        %718 = vmatpush2.msra.mxu0 0.0
        %719 = vmatprep.subr.mxu0 0.0
        %720 = vmatpush2.msra.mxu0 0.0
        %721 = vmatprep.subr.mxu0 0.0
        %722 = vmatpush2.msra.mxu0 0.0
        %723 = vmatprep.subr.mxu0 0.0
        %724 = vmatpush2.msra.mxu0 0.0
        %725 = vmatprep.subr.mxu0 0.0
        %726 = vmatpush2.msra.mxu0 0.0
        %727 = vmatprep.subr.mxu0 0.0
        %728 = vmatpush2.msra.mxu0 0.0
        %729 = vmatprep.subr.mxu0 0.0
        %730 = vmatpush2.msra.mxu0 0.0
        %731 = vmatprep.subr.mxu0 0.0
        %732 = vmatpush2.msra.mxu0 0.0
        %733 = vmatprep.mubr.f32.mxu0 0.0
        %734 = vmatmul.mubr.f32.gmra.mxu0 %v629
        %v735 = vpop.f32.mrf.mxu0
        %v736 = vadd.f32 %v667, %v735
        %v737 = vpop.f32.mrf.mxu0
        %738 = vdwg.mxu0
        %v739 = vmax.f32 %v736, 0.0
        %v740 = vadd.f32 %v739, %v629
        %v741 = vld [vmem:[#allocation10] sm:$0xf]
        %v742 = vld [vmem:[#allocation10 + $0x4] sm:$0xf]
        %v743 = vld [vmem:[#allocation10 + $0x8] sm:$0xf]
        %v744 = vld [vmem:[#allocation10 + $0xc] sm:$0xf]
        %v745 = vld [vmem:[#allocation10 + $0x10] sm:$0xf]
        %v746 = vld [vmem:[#allocation10 + $0x14] sm:$0xf]
        %v747 = vld [vmem:[#allocation10 + $0x18] sm:$0xf]
        %v748 = vld [vmem:[#allocation10 + $0x1c] sm:$0xf]
        %v749 = vld [vmem:[#allocation10 + $0x20] sm:$0xf]
        %v750 = vld [vmem:[#allocation10 + $0x24] sm:$0xf]
        %v751 = vld [vmem:[#allocation10 + $0x28] sm:$0xf]
        %v752 = vld [vmem:[#allocation10 + $0x2c] sm:$0xf]
        %v753 = vld [vmem:[#allocation10 + $0x30] sm:$0xf]
        %v754 = vld [vmem:[#allocation10 + $0x34] sm:$0xf]
        %v755 = vld [vmem:[#allocation10 + $0x38] sm:$0xf]
        %v756 = vld [vmem:[#allocation10 + $0x3c] sm:$0xf]
        %v757 = vunpack.c.l.bf16 %v741
        %v758 = vunpack.c.l.bf16 %v742
        %v759 = vunpack.c.l.bf16 %v743
        %v760 = vunpack.c.l.bf16 %v744
        %v761 = vunpack.c.l.bf16 %v745
        %v762 = vunpack.c.l.bf16 %v746
        %v763 = vunpack.c.l.bf16 %v747
        %v764 = vunpack.c.l.bf16 %v748
        %v765 = vunpack.c.l.bf16 %v749
        %v766 = vunpack.c.l.bf16 %v750
        %v767 = vunpack.c.l.bf16 %v751
        %v768 = vunpack.c.l.bf16 %v752
        %v769 = vunpack.c.l.bf16 %v753
        %v770 = vunpack.c.l.bf16 %v754
        %v771 = vunpack.c.l.bf16 %v755
        %v772 = vunpack.c.l.bf16 %v756
        %v773 = vld [vmem:[%s8] sm:$0x1]
        %v775 = vlaneseq
        %v776 = vshrl.u32 %v775, 7
        %v777 = vsub.s32 0, %v776
        %v778 = vrot.slane %v773, %v777
        %780 = vmatprep.subr.mxu0 0.0
        %781 = vmatpush1.msra.mxu0 %v772
        %782 = vmatprep.subr.mxu0 0.0
        %783 = vmatpush1.msra.mxu0 %v771
        %784 = vmatprep.subr.mxu0 0.0
        %785 = vmatpush1.msra.mxu0 %v770
        %786 = vmatprep.subr.mxu0 0.0
        %787 = vmatpush1.msra.mxu0 %v769
        %788 = vmatprep.subr.mxu0 0.0
        %789 = vmatpush1.msra.mxu0 %v768
        %790 = vmatprep.subr.mxu0 0.0
        %791 = vmatpush1.msra.mxu0 %v767
        %792 = vmatprep.subr.mxu0 0.0
        %793 = vmatpush1.msra.mxu0 %v766
        %794 = vmatprep.subr.mxu0 0.0
        %795 = vmatpush1.msra.mxu0 %v765
        %796 = vmatprep.subr.mxu0 0.0
        %797 = vmatpush1.msra.mxu0 %v764
        %798 = vmatprep.subr.mxu0 0.0
        %799 = vmatpush1.msra.mxu0 %v763
        %800 = vmatprep.subr.mxu0 0.0
        %801 = vmatpush1.msra.mxu0 %v762
        %802 = vmatprep.subr.mxu0 0.0
        %803 = vmatpush1.msra.mxu0 %v761
        %804 = vmatprep.subr.mxu0 0.0
        %805 = vmatpush1.msra.mxu0 %v760
        %806 = vmatprep.subr.mxu0 0.0
        %807 = vmatpush1.msra.mxu0 %v759
        %808 = vmatprep.subr.mxu0 0.0
        %809 = vmatpush1.msra.mxu0 %v758
        %810 = vmatprep.subr.mxu0 0.0
        %811 = vmatpush1.msra.mxu0 %v757
        %812 = vmatprep.subr.mxu0 0.0
        %813 = vmatpush2.msra.mxu0 0.0
        %814 = vmatprep.subr.mxu0 0.0
        %815 = vmatpush2.msra.mxu0 0.0
        %816 = vmatprep.subr.mxu0 0.0
        %817 = vmatpush2.msra.mxu0 0.0
        %818 = vmatprep.subr.mxu0 0.0
        %819 = vmatpush2.msra.mxu0 0.0
        %820 = vmatprep.subr.mxu0 0.0
        %821 = vmatpush2.msra.mxu0 0.0
        %822 = vmatprep.subr.mxu0 0.0
        %823 = vmatpush2.msra.mxu0 0.0
        %824 = vmatprep.subr.mxu0 0.0
        %825 = vmatpush2.msra.mxu0 0.0
        %826 = vmatprep.subr.mxu0 0.0
        %827 = vmatpush2.msra.mxu0 0.0
        %828 = vmatprep.subr.mxu0 0.0
        %829 = vmatpush2.msra.mxu0 0.0
        %830 = vmatprep.subr.mxu0 0.0
        %831 = vmatpush2.msra.mxu0 0.0
        %832 = vmatprep.subr.mxu0 0.0
        %833 = vmatpush2.msra.mxu0 0.0
        %834 = vmatprep.subr.mxu0 0.0
        %835 = vmatpush2.msra.mxu0 0.0
        %836 = vmatprep.subr.mxu0 0.0
        %837 = vmatpush2.msra.mxu0 0.0
        %838 = vmatprep.subr.mxu0 0.0
        %839 = vmatpush2.msra.mxu0 0.0
        %840 = vmatprep.subr.mxu0 0.0
        %841 = vmatpush2.msra.mxu0 0.0
        %842 = vmatprep.subr.mxu0 0.0
        %843 = vmatpush2.msra.mxu0 0.0
        %844 = vmatprep.mubr.f32.mxu0 0.0
        %845 = vmatmul.mubr.f32.gmra.mxu0 %v740
        %v846 = vpop.f32.mrf.mxu0
        %v847 = vadd.f32 %v778, %v846
        %v848 = vpop.f32.mrf.mxu0
        %849 = vdwg.mxu0
        %850 = vst [vmem:[%s405] sm:$0xff] %v847
        %s851 = sand.u32 %s230, 1
        %s852 = scalar_lea.sflag [#allocation4], %s851
        %s853 = sand.u32 %s230, 1
        %s854 = smul.addr %s853, 8
        %s855 = scalar_lea.vmem [#allocation11], %s854
        // Predicated region
        $region77: #{tpu_custom_call.1} parent=55 // pred_check
          %p856 = pneg %p240
        $region78: #{tpu_custom_call.1} parent=55 // pred_check_branch
          %858 = sbr.rel (%p856) target = $region80
        $region79: #{tpu_custom_call.1} parent=55 // pred_region
          %s860 = ssub.s32 128, 128
          %861 = vsyncadd %s852, %s860
          %s862 = smul.addr %s28, 128
          %s863 = scalar_lea.hbm %s9, %s862
          %s865 = sshll.u32 %s855, 4
          %s866 = int_to_ptr.vmem [resolvable:$true] %s865
          %868 = dma.vmem_to_hbm [thread:$0]  %s866, 128, %s863, %s852
        $region80: #{tpu_custom_call.1} parent=55 // pred_fallthru
          _
      $region56: #{tpu_custom_call.1} parent=5 // pred_fallthru
        _
      %p869 = scmp.le.s32.totalorder 2, %s23
      // Predicated region
      $region81: #{tpu_custom_call.1} parent=5 // pred_check
        %p870 = pneg %p869
      $region82: #{tpu_custom_call.1} parent=5 // pred_check_branch
        %872 = sbr.rel (%p870) target = $region84
      $region83: #{tpu_custom_call.1} parent=5 // pred_region
        %s873 = ssub.s32 %s23, 2
        // Predicated region
        $region85: #{tpu_custom_call.1} parent=83 // pred_check
          %p874 = pneg %p246
        $region86: #{tpu_custom_call.1} parent=83 // pred_check_branch
          %876 = sbr.rel (%p874) target = $region88
        $region87: #{tpu_custom_call.1} parent=83 // pred_region
          %s877 = sand.u32 %s231, 1
          %s878 = scalar_lea.sflag [#allocation4], %s877
          %s879 = sand.u32 %s231, 1
          %s880 = smul.addr %s879, 8
          %s881 = scalar_lea.vmem [#allocation11], %s880
          %882 = dma.done %s878, 128
        $region88: #{tpu_custom_call.1} parent=83 // pred_fallthru
          _
      $region84: #{tpu_custom_call.1} parent=5 // pred_fallthru
        _
    $region6: #{tpu_custom_call.1} parent=1 // loop_footer
      %s27 = sadd.s32 1, %s23
    $region7: #{tpu_custom_call.1} parent=1 // loop_footer_branch
      %22 = sbr.rel target = $region3
    $region8: #{tpu_custom_call.1} parent=1 // loop_exit
      _
    %883 = vsyncpa [#allocation3], 1
    %s884 = scalar_lea.sflag [#allocation3], 1
    %885 = vsyncpa %s884, 1
    %886 = vsyncpa [#allocation6], 1
    %887 = vsyncpa [#allocation9], 1
    %888 = vsyncpa [#allocation4], 1
    %s889 = scalar_lea.sflag [#allocation4], 1
    %890 = vsyncpa %s889, 1

</llo_original>
